<compile_context>
chip_gen: v7x
topology: tpu7x:2x2x1
jax: 0.10.0
libtpu: 0.0.40
codegen_flags: <defaults>
</compile_context>

<pallas_src>
import jax
import jax.numpy as jnp
from jax.experimental import pallas as pl
from jax.experimental.pallas import tpu as pltpu

IN_DIM = 4        # CartPole observation size
HID = 64
OUT_DIM = 2
OUT_PAD = 128     # layer-3 MXU width (lane-dense pass; only lanes [0, 2) are stored)
MAX_TILE_B = 1024


def mlp_kernel(x_ref, w1_ref, b1_ref, w2_ref, b2_ref, w3_ref, b3_ref, o_ref):
    x = x_ref[...]                                   # (TB, 4)
    w1 = w1_ref[...]                                 # (4, 64)

    # Layer 1: K=4 contraction on the VPU via 4 unrolled broadcast multiply-adds
    # (bias folded in as the accumulator seed).
    acc1 = b1_ref[...]                               # (1, 64) -> broadcasts to (TB, 64)
    for k in range(IN_DIM):
        acc1 = acc1 + x[:, k:k + 1] * w1[k:k + 1, :]
    h1 = jnp.tanh(acc1)                              # (TB, 64)

    # Layers 2 & 3 on the MXU with f32 accumulation.
    h2 = jnp.tanh(jnp.dot(h1, w2_ref[...],
                          preferred_element_type=jnp.float32) + b2_ref[...])   # (TB, 64)
    out = jnp.dot(h2, w3_ref[...],
                  preferred_element_type=jnp.float32) + b3_ref[...]            # (TB, 128)

    # Narrow store: only the 2 real logit lanes go back to HBM.
    o_ref[...] = out[:, :OUT_DIM].astype(o_ref.dtype)


def pack_params(params):
    """Reshape biases to (1, N); pad layer-3 weight/bias to 128 lanes for the MXU."""
    w1, b1, w2, b2, w3, b3 = params
    w3_pad = jnp.zeros((HID, OUT_PAD), jnp.float32).at[:, :OUT_DIM].set(w3)
    b3_pad = jnp.zeros((1, OUT_PAD), jnp.float32).at[:, :OUT_DIM].set(b3.reshape(1, OUT_DIM))
    return (w1, b1.reshape(1, HID), w2, b2.reshape(1, HID), w3_pad, b3_pad)


def _round_up(n, m):
    return ((n + m - 1) // m) * m


def _choose_tile(B):
    # Prefer >= 2 tiles (v7x megacore), cap at MAX_TILE_B rows, keep sublane-aligned (x8).
    return min(MAX_TILE_B, max(8, _round_up((B + 1) // 2, 8)))


def net_forward(x, packed_params):
    w1, b1, w2, b2, w3_pad, b3_pad = packed_params
    B = x.shape[0]
    tile_b = _choose_tile(B)
    B_pad = _round_up(B, tile_b)
    if B_pad != B:
        x = jnp.pad(x, ((0, B_pad - B), (0, 0)))     # padded rows are sliced off below
    n_tiles = B_pad // tile_b

    # Weights/biases: constant index_map -> single DMA, VMEM-resident across all tiles.
    const2d = lambda a: pl.BlockSpec(a.shape, lambda i: (0, 0))

    n_w_elems = w1.size + b1.size + w2.size + b2.size + w3_pad.size + b3_pad.size
    cost = pl.CostEstimate(
        flops=2 * B_pad * (IN_DIM * HID + HID * HID + HID * OUT_PAD),
        transcendentals=2 * B_pad * HID,
        bytes_accessed=4 * (B_pad * IN_DIM + B_pad * OUT_DIM + n_w_elems),
    )

    out = pl.pallas_call(
        mlp_kernel,
        out_shape=jax.ShapeDtypeStruct((B_pad, OUT_DIM), jnp.float32),
        grid=(n_tiles,),
        in_specs=[
            pl.BlockSpec((tile_b, IN_DIM), lambda i: (i, 0)),    # x streams per batch tile
            const2d(w1), const2d(b1), const2d(w2), const2d(b2),
            const2d(w3_pad), const2d(b3_pad),
        ],
        out_specs=pl.BlockSpec((tile_b, OUT_DIM), lambda i: (i, 0)),
        compiler_params=pltpu.CompilerParams(dimension_semantics=("parallel",)),
        cost_estimate=cost,
    )(x, w1, b1, w2, b2, w3_pad, b3_pad)

    return out[:B] if B_pad != B else out


def init_params(key):
    # Deterministic init mimicking PyTorch Linear default: U(-1/sqrt(fan_in), 1/sqrt(fan_in)).
    # Weights stored transposed vs. PyTorch, i.e. (in_features, out_features).
    def linear(k, fan_in, fan_out):
        kw, kb = jax.random.split(k)
        bound = 1.0 / jnp.sqrt(jnp.float32(fan_in))
        w = jax.random.uniform(kw, (fan_in, fan_out), jnp.float32, -bound, bound)
        b = jax.random.uniform(kb, (fan_out,), jnp.float32, -bound, bound)
        return w, b

    k1, k2, k3 = jax.random.split(key, 3)
    w1, b1 = linear(k1, IN_DIM, HID)
    w2, b2 = linear(k2, HID, HID)
    w3, b3 = linear(k3, HID, OUT_DIM)
    return (w1, b1, w2, b2, w3, b3)


if __name__ == "__main__":
    key = jax.random.PRNGKey(0)
    kx, kp = jax.random.split(key)

    B = 512  # batched RL inference: tile chooser gives 2 tiles of 256 (both v7x cores busy)
    x = jax.random.normal(kx, (B, IN_DIM), jnp.float32)
    params = init_params(kp)
    packed = pack_params(params)

    out = net_forward(x, packed)
    out = jax.block_until_ready(out)

    # Reference in plain JAX (same math as the PyTorch module).
    w1, b1, w2, b2, w3, b3 = params
    ref = jnp.tanh(x @ w1 + b1)
    ref = jnp.tanh(ref @ w2 + b2)
    ref = ref @ w3 + b3

    assert out.shape == (B, OUT_DIM)
    assert jnp.allclose(out, ref, atol=1e-4, rtol=1e-4)

    print("KERNEL_OK")
</pallas_src>

<mosaic_0001>
module attributes {stable_mosaic.version = 11 : i64} {
  func.func @mlp_kernel(%arg0: i32, %arg1: memref<256x4xf32, #tpu.memory_space<vmem>>, %arg2: memref<4x64xf32, #tpu.memory_space<vmem>>, %arg3: memref<1x64xf32, #tpu.memory_space<vmem>>, %arg4: memref<64x64xf32, #tpu.memory_space<vmem>>, %arg5: memref<1x64xf32, #tpu.memory_space<vmem>>, %arg6: memref<64x128xf32, #tpu.memory_space<vmem>>, %arg7: memref<1x128xf32, #tpu.memory_space<vmem>>, %arg8: memref<256x2xf32, #tpu.memory_space<vmem>>) attributes {dimension_semantics = [#tpu.dimension_semantics<parallel>], iteration_bounds = array<i64: 2>, scalar_prefetch = 0 : i64, scratch_operands = 0 : i64, tpu.core_type = #tpu.core_type<tc>, window_params = [{transform_indices = @transform_0, window_bounds = array<i64: 256, 4>}, {pipeline_mode = #tpu.pipeline_mode<synchronous>, transform_indices = @transform_1, window_bounds = array<i64: 4, 64>}, {pipeline_mode = #tpu.pipeline_mode<synchronous>, transform_indices = @transform_2, window_bounds = array<i64: 1, 64>}, {pipeline_mode = #tpu.pipeline_mode<synchronous>, transform_indices = @transform_3, window_bounds = array<i64: 64, 64>}, {pipeline_mode = #tpu.pipeline_mode<synchronous>, transform_indices = @transform_4, window_bounds = array<i64: 1, 64>}, {pipeline_mode = #tpu.pipeline_mode<synchronous>, transform_indices = @transform_5, window_bounds = array<i64: 64, 128>}, {pipeline_mode = #tpu.pipeline_mode<synchronous>, transform_indices = @transform_6, window_bounds = array<i64: 1, 128>}, {transform_indices = @transform_7, window_bounds = array<i64: 256, 2>}]} {
    %c0 = arith.constant 0 : index
    %c0_0 = arith.constant 0 : index
    %0 = vector.load %arg1[%c0, %c0_0] : memref<256x4xf32, #tpu.memory_space<vmem>>, vector<256x4xf32>
    %c0_1 = arith.constant 0 : index
    %c0_2 = arith.constant 0 : index
    %1 = vector.load %arg2[%c0_1, %c0_2] : memref<4x64xf32, #tpu.memory_space<vmem>>, vector<4x64xf32>
    %c0_3 = arith.constant 0 : index
    %c0_4 = arith.constant 0 : index
    %2 = vector.load %arg3[%c0_3, %c0_4] : memref<1x64xf32, #tpu.memory_space<vmem>>, vector<1x64xf32>
    %3 = vector.extract_strided_slice %0 {offsets = [0, 0], sizes = [256, 1], strides = [1, 1]} : vector<256x4xf32> to vector<256x1xf32>
    %4 = vector.extract_strided_slice %1 {offsets = [0, 0], sizes = [1, 64], strides = [1, 1]} : vector<4x64xf32> to vector<1x64xf32>
    %5 = vector.broadcast %3 : vector<256x1xf32> to vector<256x64xf32>
    %6 = vector.broadcast %4 : vector<1x64xf32> to vector<256x64xf32>
    %7 = arith.mulf %5, %6 : vector<256x64xf32>
    %8 = vector.broadcast %2 : vector<1x64xf32> to vector<256x64xf32>
    %9 = arith.addf %8, %7 : vector<256x64xf32>
    %10 = vector.extract_strided_slice %0 {offsets = [0, 1], sizes = [256, 1], strides = [1, 1]} : vector<256x4xf32> to vector<256x1xf32>
    %11 = vector.extract_strided_slice %1 {offsets = [1, 0], sizes = [1, 64], strides = [1, 1]} : vector<4x64xf32> to vector<1x64xf32>
    %12 = vector.broadcast %10 : vector<256x1xf32> to vector<256x64xf32>
    %13 = vector.broadcast %11 : vector<1x64xf32> to vector<256x64xf32>
    %14 = arith.mulf %12, %13 : vector<256x64xf32>
    %15 = arith.addf %9, %14 : vector<256x64xf32>
    %16 = vector.extract_strided_slice %0 {offsets = [0, 2], sizes = [256, 1], strides = [1, 1]} : vector<256x4xf32> to vector<256x1xf32>
    %17 = vector.extract_strided_slice %1 {offsets = [2, 0], sizes = [1, 64], strides = [1, 1]} : vector<4x64xf32> to vector<1x64xf32>
    %18 = vector.broadcast %16 : vector<256x1xf32> to vector<256x64xf32>
    %19 = vector.broadcast %17 : vector<1x64xf32> to vector<256x64xf32>
    %20 = arith.mulf %18, %19 : vector<256x64xf32>
    %21 = arith.addf %15, %20 : vector<256x64xf32>
    %22 = vector.extract_strided_slice %0 {offsets = [0, 3], sizes = [256, 1], strides = [1, 1]} : vector<256x4xf32> to vector<256x1xf32>
    %23 = vector.extract_strided_slice %1 {offsets = [3, 0], sizes = [1, 64], strides = [1, 1]} : vector<4x64xf32> to vector<1x64xf32>
    %24 = vector.broadcast %22 : vector<256x1xf32> to vector<256x64xf32>
    %25 = vector.broadcast %23 : vector<1x64xf32> to vector<256x64xf32>
    %26 = arith.mulf %24, %25 : vector<256x64xf32>
    %27 = arith.addf %21, %26 : vector<256x64xf32>
    %28 = math.tanh %27 : vector<256x64xf32>
    %c0_5 = arith.constant 0 : index
    %c0_6 = arith.constant 0 : index
    %29 = vector.load %arg4[%c0_5, %c0_6] : memref<64x64xf32, #tpu.memory_space<vmem>>, vector<64x64xf32>
    %cst = arith.constant dense<0.000000e+00> : vector<256x64xf32>
    %30 = tpu.matmul %28, %29, %cst {dimension_numbers = #tpu.dot_dimension_numbers<[1], [0], [0], [1], [0, 0, 1, 1], [], []>} : vector<256x64xf32>, vector<64x64xf32>, vector<256x64xf32> -> vector<256x64xf32>
    %c0_7 = arith.constant 0 : index
    %c0_8 = arith.constant 0 : index
    %31 = vector.load %arg5[%c0_7, %c0_8] : memref<1x64xf32, #tpu.memory_space<vmem>>, vector<1x64xf32>
    %32 = vector.broadcast %31 : vector<1x64xf32> to vector<256x64xf32>
    %33 = arith.addf %30, %32 : vector<256x64xf32>
    %34 = math.tanh %33 : vector<256x64xf32>
    %c0_9 = arith.constant 0 : index
    %c0_10 = arith.constant 0 : index
    %35 = vector.load %arg6[%c0_9, %c0_10] : memref<64x128xf32, #tpu.memory_space<vmem>>, vector<64x128xf32>
    %cst_11 = arith.constant dense<0.000000e+00> : vector<256x128xf32>
    %36 = tpu.matmul %34, %35, %cst_11 {dimension_numbers = #tpu.dot_dimension_numbers<[1], [0], [0], [1], [0, 0, 1, 1], [], []>} : vector<256x64xf32>, vector<64x128xf32>, vector<256x128xf32> -> vector<256x128xf32>
    %c0_12 = arith.constant 0 : index
    %c0_13 = arith.constant 0 : index
    %37 = vector.load %arg7[%c0_12, %c0_13] : memref<1x128xf32, #tpu.memory_space<vmem>>, vector<1x128xf32>
    %38 = vector.broadcast %37 : vector<1x128xf32> to vector<256x128xf32>
    %39 = arith.addf %36, %38 : vector<256x128xf32>
    %40 = vector.extract_strided_slice %39 {offsets = [0, 0], sizes = [256, 2], strides = [1, 1]} : vector<256x128xf32> to vector<256x2xf32>
    %c0_14 = arith.constant 0 : index
    %c0_15 = arith.constant 0 : index
    %41 = vector.load %arg8[%c0_14, %c0_15] : memref<256x2xf32, #tpu.memory_space<vmem>>, vector<256x2xf32>
    tpu.vector_store %arg8[%c0_14, %c0_15], %40 {strides = array<i32>} : memref<256x2xf32, #tpu.memory_space<vmem>>, vector<256x2xf32>,
    return
  }
  func.func @transform_0(%arg0: i32) -> (i32, i32) {
    %c0_i32 = arith.constant 0 : i32
    %c0_i32_0 = arith.constant 0 : i32
    return %arg0, %c0_i32 : i32, i32
  }
  func.func @transform_1(%arg0: i32) -> (i32, i32) {
    %c0_i32 = arith.constant 0 : i32
    %c0_i32_0 = arith.constant 0 : i32
    %c0_i32_1 = arith.constant 0 : i32
    return %c0_i32, %c0_i32_0 : i32, i32
  }
  func.func @transform_2(%arg0: i32) -> (i32, i32) {
    %c0_i32 = arith.constant 0 : i32
    %c0_i32_0 = arith.constant 0 : i32
    %c0_i32_1 = arith.constant 0 : i32
    return %c0_i32, %c0_i32_0 : i32, i32
  }
  func.func @transform_3(%arg0: i32) -> (i32, i32) {
    %c0_i32 = arith.constant 0 : i32
    %c0_i32_0 = arith.constant 0 : i32
    %c0_i32_1 = arith.constant 0 : i32
    return %c0_i32, %c0_i32_0 : i32, i32
  }
  func.func @transform_4(%arg0: i32) -> (i32, i32) {
    %c0_i32 = arith.constant 0 : i32
    %c0_i32_0 = arith.constant 0 : i32
    %c0_i32_1 = arith.constant 0 : i32
    return %c0_i32, %c0_i32_0 : i32, i32
  }
  func.func @transform_5(%arg0: i32) -> (i32, i32) {
    %c0_i32 = arith.constant 0 : i32
    %c0_i32_0 = arith.constant 0 : i32
    %c0_i32_1 = arith.constant 0 : i32
    return %c0_i32, %c0_i32_0 : i32, i32
  }
  func.func @transform_6(%arg0: i32) -> (i32, i32) {
    %c0_i32 = arith.constant 0 : i32
    %c0_i32_0 = arith.constant 0 : i32
    %c0_i32_1 = arith.constant 0 : i32
    return %c0_i32, %c0_i32_0 : i32, i32
  }
  func.func @transform_7(%arg0: i32) -> (i32, i32) {
    %c0_i32 = arith.constant 0 : i32
    %c0_i32_0 = arith.constant 0 : i32
    return %arg0, %c0_i32 : i32, i32
  }
}

</mosaic_0001>

<llo_original>
// kernel: tpu_custom_call.1
$region0: #{tpu_custom_call.1}
  #allocation0 [shape = 'u32[]', space=smem, size = 0x4, offset = 0x4, fixed_abs, tag = 'smem constant byte address 0x4 - core index']
  #allocation1 [shape = 'u32[144,128]{1,0:T(1,128)}', space=vmem, size = 0x12000, scoped, tag = 'internal scratch']
  %s0 = inlined_call_operand.vmem [shape: f32[512,4], index: 0, kind: input, shape index: {}]
  %s1 = inlined_call_operand.vmem [shape: f32[4,64], index: 1, kind: input, shape index: {}]
  %s2 = inlined_call_operand.vmem [shape: f32[1,64], index: 2, kind: input, shape index: {}]
  %s3 = inlined_call_operand.vmem [shape: f32[64,64], index: 3, kind: input, shape index: {}]
  %s4 = inlined_call_operand.vmem [shape: f32[1,64], index: 4, kind: input, shape index: {}]
  %s5 = inlined_call_operand.vmem [shape: f32[64,128], index: 5, kind: input, shape index: {}]
  %s6 = inlined_call_operand.vmem [shape: f32[1,128], index: 6, kind: input, shape index: {}]
  %s7 = inlined_call_operand.vmem [shape: f32[512,2], index: 7, kind: output, shape index: {}]
  %s8 = sld [smem:[#allocation0]]
  $region61: #{tpu_custom_call.1} parent=0
    _
  %s10 = ssub.s32 1, %s8
  %s11 = scalar_select 0, %s10, %s8
  loop: start=0, step=1, limit=4
  $region2: #{tpu_custom_call.1} parent=0 // loop_pre_header
    _
  $region3: #{tpu_custom_call.1} parent=0 // loop_header
    %s13 = sphi 0, %s17
    %p14 = scmp.ge.s32.totalorder %s13, 4
    %s23 = sphi 0, %s25
    %s26 = sphi 0, %s23
    %s27 = sphi 0, %s26
    %s43 = sphi 0, %s27
    %s47 = sphi 0, %s47
    %s49 = sphi 0, %s47
    %s50 = sphi 0, %s49
    %s64 = sphi 0, %s50
    %s68 = sphi 0, %s68
    %s70 = sphi 0, %s68
    %s71 = sphi 0, %s70
    %s85 = sphi 0, %s71
    %s89 = sphi 0, %s89
    %s91 = sphi 0, %s89
    %s92 = sphi 0, %s91
    %s106 = sphi 0, %s92
    %s110 = sphi 0, %s110
    %s112 = sphi 0, %s110
    %s113 = sphi 0, %s112
    %s127 = sphi 0, %s113
    %s131 = sphi 0, %s131
    %s133 = sphi 0, %s131
    %s134 = sphi 0, %s133
    %s148 = sphi 0, %s134
    %s152 = sphi 0, %s152
    %s154 = sphi 0, %s152
    %s155 = sphi 0, %s154
    %s169 = sphi 0, %s155
    %s175 = sphi 0, %s177
    %s178 = sphi 0, %s175
    %s179 = sphi 0, %s178
    %s195 = sphi 0, %s179
  $region4: #{tpu_custom_call.1} parent=0 // loop_header_branch
    %16 = sbr.rel (%p14) target = $region8
  $region5: #{tpu_custom_call.1} parent=0 // loop_body
    %s18 = ssub.s32 %s13, 1
    %s19 = ssub.s32 %s13, 2
    %s20 = sadd.s32 %s13, 1
    %s21 = ssub.s32 %s13, %s20
    %p22 = scmp.eq.s32.totalorder %s21, 0
    %s24 = sadd.s32 %s23, 1
    %s25 = scalar_select %p22, %s23, %s24
    %p28 = pneg %p22
    %p29 = scmp.eq.s32.totalorder %s13, 1
    %p30 = por %p28, %p29
    %p31 = scmp.ne.s32.totalorder %s23, %s26
    %p32 = scmp.eq.s32.totalorder %s13, 0
    %p33 = por %p31, %p32
    %p34 = scmp.ne.s32.totalorder %s23, %s26
    %p35 = scmp.eq.s32.totalorder %s18, 1
    %p36 = por %p34, %p35
    %p37 = scmp.ne.s32.totalorder %s26, %s27
    %p38 = scmp.eq.s32.totalorder %s18, 0
    %p39 = por %p37, %p38
    %p40 = scmp.ne.s32.totalorder %s26, %s27
    %p41 = scmp.eq.s32.totalorder %s19, 1
    %p42 = por %p40, %p41
    %p44 = scmp.ne.s32.totalorder %s27, %s43
    %p45 = scmp.eq.s32.totalorder %s19, 0
    %p46 = por %p44, %p45
    %s48 = sadd.s32 %s47, 1
    %p51 = scmp.eq.s32.totalorder %s13, 1
    %p52 = scmp.ne.s32.totalorder %s47, %s49
    %p53 = scmp.eq.s32.totalorder %s13, 0
    %p54 = por %p52, %p53
    %p55 = scmp.ne.s32.totalorder %s47, %s49
    %p56 = scmp.eq.s32.totalorder %s18, 1
    %p57 = por %p55, %p56
    %p58 = scmp.ne.s32.totalorder %s49, %s50
    %p59 = scmp.eq.s32.totalorder %s18, 0
    %p60 = por %p58, %p59
    %p61 = scmp.ne.s32.totalorder %s49, %s50
    %p62 = scmp.eq.s32.totalorder %s19, 1
    %p63 = por %p61, %p62
    %p65 = scmp.ne.s32.totalorder %s50, %s64
    %p66 = scmp.eq.s32.totalorder %s19, 0
    %p67 = por %p65, %p66
    %s69 = sadd.s32 %s68, 1
    %p72 = scmp.eq.s32.totalorder %s13, 1
    %p73 = scmp.ne.s32.totalorder %s68, %s70
    %p74 = scmp.eq.s32.totalorder %s13, 0
    %p75 = por %p73, %p74
    %p76 = scmp.ne.s32.totalorder %s68, %s70
    %p77 = scmp.eq.s32.totalorder %s18, 1
    %p78 = por %p76, %p77
    %p79 = scmp.ne.s32.totalorder %s70, %s71
    %p80 = scmp.eq.s32.totalorder %s18, 0
    %p81 = por %p79, %p80
    %p82 = scmp.ne.s32.totalorder %s70, %s71
    %p83 = scmp.eq.s32.totalorder %s19, 1
    %p84 = por %p82, %p83
    %p86 = scmp.ne.s32.totalorder %s71, %s85
    %p87 = scmp.eq.s32.totalorder %s19, 0
    %p88 = por %p86, %p87
    %s90 = sadd.s32 %s89, 1
    %p93 = scmp.eq.s32.totalorder %s13, 1
    %p94 = scmp.ne.s32.totalorder %s89, %s91
    %p95 = scmp.eq.s32.totalorder %s13, 0
    %p96 = por %p94, %p95
    %p97 = scmp.ne.s32.totalorder %s89, %s91
    %p98 = scmp.eq.s32.totalorder %s18, 1
    %p99 = por %p97, %p98
    %p100 = scmp.ne.s32.totalorder %s91, %s92
    %p101 = scmp.eq.s32.totalorder %s18, 0
    %p102 = por %p100, %p101
    %p103 = scmp.ne.s32.totalorder %s91, %s92
    %p104 = scmp.eq.s32.totalorder %s19, 1
    %p105 = por %p103, %p104
    %p107 = scmp.ne.s32.totalorder %s92, %s106
    %p108 = scmp.eq.s32.totalorder %s19, 0
    %p109 = por %p107, %p108
    %s111 = sadd.s32 %s110, 1
    %p114 = scmp.eq.s32.totalorder %s13, 1
    %p115 = scmp.ne.s32.totalorder %s110, %s112
    %p116 = scmp.eq.s32.totalorder %s13, 0
    %p117 = por %p115, %p116
    %p118 = scmp.ne.s32.totalorder %s110, %s112
    %p119 = scmp.eq.s32.totalorder %s18, 1
    %p120 = por %p118, %p119
    %p121 = scmp.ne.s32.totalorder %s112, %s113
    %p122 = scmp.eq.s32.totalorder %s18, 0
    %p123 = por %p121, %p122
    %p124 = scmp.ne.s32.totalorder %s112, %s113
    %p125 = scmp.eq.s32.totalorder %s19, 1
    %p126 = por %p124, %p125
    %p128 = scmp.ne.s32.totalorder %s113, %s127
    %p129 = scmp.eq.s32.totalorder %s19, 0
    %p130 = por %p128, %p129
    %s132 = sadd.s32 %s131, 1
    %p135 = scmp.eq.s32.totalorder %s13, 1
    %p136 = scmp.ne.s32.totalorder %s131, %s133
    %p137 = scmp.eq.s32.totalorder %s13, 0
    %p138 = por %p136, %p137
    %p139 = scmp.ne.s32.totalorder %s131, %s133
    %p140 = scmp.eq.s32.totalorder %s18, 1
    %p141 = por %p139, %p140
    %p142 = scmp.ne.s32.totalorder %s133, %s134
    %p143 = scmp.eq.s32.totalorder %s18, 0
    %p144 = por %p142, %p143
    %p145 = scmp.ne.s32.totalorder %s133, %s134
    %p146 = scmp.eq.s32.totalorder %s19, 1
    %p147 = por %p145, %p146
    %p149 = scmp.ne.s32.totalorder %s134, %s148
    %p150 = scmp.eq.s32.totalorder %s19, 0
    %p151 = por %p149, %p150
    %s153 = sadd.s32 %s152, 1
    %p156 = scmp.eq.s32.totalorder %s13, 1
    %p157 = scmp.ne.s32.totalorder %s152, %s154
    %p158 = scmp.eq.s32.totalorder %s13, 0
    %p159 = por %p157, %p158
    %p160 = scmp.ne.s32.totalorder %s152, %s154
    %p161 = scmp.eq.s32.totalorder %s18, 1
    %p162 = por %p160, %p161
    %p163 = scmp.ne.s32.totalorder %s154, %s155
    %p164 = scmp.eq.s32.totalorder %s18, 0
    %p165 = por %p163, %p164
    %p166 = scmp.ne.s32.totalorder %s154, %s155
    %p167 = scmp.eq.s32.totalorder %s19, 1
    %p168 = por %p166, %p167
    %p170 = scmp.ne.s32.totalorder %s155, %s169
    %p171 = scmp.eq.s32.totalorder %s19, 0
    %p172 = por %p170, %p171
    %s173 = ssub.s32 %s13, %s20
    %p174 = scmp.eq.s32.totalorder %s173, 0
    %s176 = sadd.s32 %s175, 1
    %s177 = scalar_select %p174, %s175, %s176
    %p180 = pneg %p174
    %p181 = scmp.eq.s32.totalorder %s13, 1
    %p182 = por %p180, %p181
    %p183 = scmp.ne.s32.totalorder %s175, %s178
    %p184 = scmp.eq.s32.totalorder %s13, 0
    %p185 = por %p183, %p184
    %p186 = scmp.ne.s32.totalorder %s175, %s178
    %p187 = scmp.eq.s32.totalorder %s18, 1
    %p188 = por %p186, %p187
    %p189 = scmp.ne.s32.totalorder %s178, %s179
    %p190 = scmp.eq.s32.totalorder %s18, 0
    %p191 = por %p189, %p190
    %p192 = scmp.ne.s32.totalorder %s178, %s179
    %p193 = scmp.eq.s32.totalorder %s19, 1
    %p194 = por %p192, %p193
    %p196 = scmp.ne.s32.totalorder %s179, %s195
    %p197 = scmp.eq.s32.totalorder %s19, 0
    %p198 = por %p196, %p197
    %p199 = scmp.le.s32.totalorder 1, %s13
    %p200 = scmp.lt.s32.totalorder %s13, 3
    %p201 = pnand %p199, %p200
    %p202 = pneg %p201
    // Predicated region
    $region9: #{tpu_custom_call.1} parent=5 // pred_check
      _
    $region10: #{tpu_custom_call.1} parent=5 // pred_check_branch
      %204 = sbr.rel (%p201) target = $region12
    $region11: #{tpu_custom_call.1} parent=5 // pred_region
      %s205 = ssub.s32 %s13, 1
      // Predicated region
      $region13: #{tpu_custom_call.1} parent=11 // pred_check
        %p206 = pneg %p60
      $region14: #{tpu_custom_call.1} parent=11 // pred_check_branch
        %208 = sbr.rel (%p206) target = $region16
      $region15: #{tpu_custom_call.1} parent=11 // pred_region
        _
      $region16: #{tpu_custom_call.1} parent=11 // pred_fallthru
        _
      // Predicated region
      $region17: #{tpu_custom_call.1} parent=11 // pred_check
        %p209 = pneg %p81
      $region18: #{tpu_custom_call.1} parent=11 // pred_check_branch
        %211 = sbr.rel (%p209) target = $region20
      $region19: #{tpu_custom_call.1} parent=11 // pred_region
        _
      $region20: #{tpu_custom_call.1} parent=11 // pred_fallthru
        _
      // Predicated region
      $region21: #{tpu_custom_call.1} parent=11 // pred_check
        %p212 = pneg %p102
      $region22: #{tpu_custom_call.1} parent=11 // pred_check_branch
        %214 = sbr.rel (%p212) target = $region24
      $region23: #{tpu_custom_call.1} parent=11 // pred_region
        _
      $region24: #{tpu_custom_call.1} parent=11 // pred_fallthru
        _
      // Predicated region
      $region25: #{tpu_custom_call.1} parent=11 // pred_check
        %p215 = pneg %p123
      $region26: #{tpu_custom_call.1} parent=11 // pred_check_branch
        %217 = sbr.rel (%p215) target = $region28
      $region27: #{tpu_custom_call.1} parent=11 // pred_region
        _
      $region28: #{tpu_custom_call.1} parent=11 // pred_fallthru
        _
      // Predicated region
      $region29: #{tpu_custom_call.1} parent=11 // pred_check
        %p218 = pneg %p144
      $region30: #{tpu_custom_call.1} parent=11 // pred_check_branch
        %220 = sbr.rel (%p218) target = $region32
      $region31: #{tpu_custom_call.1} parent=11 // pred_region
        _
      $region32: #{tpu_custom_call.1} parent=11 // pred_fallthru
        _
      // Predicated region
      $region33: #{tpu_custom_call.1} parent=11 // pred_check
        %p221 = pneg %p165
      $region34: #{tpu_custom_call.1} parent=11 // pred_check_branch
        %223 = sbr.rel (%p221) target = $region36
      $region35: #{tpu_custom_call.1} parent=11 // pred_region
        _
      $region36: #{tpu_custom_call.1} parent=11 // pred_fallthru
        _
    $region12: #{tpu_custom_call.1} parent=5 // pred_fallthru
      _
    %p224 = scmp.lt.s32.totalorder %s13, 2
    // Predicated region
    $region37: #{tpu_custom_call.1} parent=5 // pred_check
      %p225 = pneg %p224
    $region38: #{tpu_custom_call.1} parent=5 // pred_check_branch
      %227 = sbr.rel (%p225) target = $region40
    $region39: #{tpu_custom_call.1} parent=5 // pred_region
      // Predicated region
      $region41: #{tpu_custom_call.1} parent=39 // pred_check
        %p228 = pneg %p33
      $region42: #{tpu_custom_call.1} parent=39 // pred_check_branch
        %230 = sbr.rel (%p228) target = $region44
      $region43: #{tpu_custom_call.1} parent=39 // pred_region
        %s231 = smul.u32 32, %s13
        %p232 = scmp.lt.s32.totalorder %s231, 63
        %s233 = scalar_select %p232, %s231, 63
        %s234 = smul.addr %s233, 8
        %s235 = scalar_lea.vmem %s0, %s234
        %s236 = smul.u32 32, %s13
      $region44: #{tpu_custom_call.1} parent=39 // pred_fallthru
        _
    $region40: #{tpu_custom_call.1} parent=5 // pred_fallthru
      _
    %p237 = scmp.le.s32.totalorder 1, %s13
    %p238 = scmp.lt.s32.totalorder %s13, 3
    %p239 = pnand %p237, %p238
    %p240 = pneg %p239
    // Predicated region
    $region45: #{tpu_custom_call.1} parent=5 // pred_check
      _
    $region46: #{tpu_custom_call.1} parent=5 // pred_check_branch
      %242 = sbr.rel (%p239) target = $region48
    $region47: #{tpu_custom_call.1} parent=5 // pred_region
      %s243 = ssub.s32 %s13, 1
      %s244 = smul.u32 32, %s18
      %p245 = scmp.lt.s32.totalorder %s244, 63
      %s246 = scalar_select %p245, %s244, 63
      %s247 = smul.addr %s246, 8
      %s248 = scalar_lea.vmem %s0, %s247
      %p249 = pneg %p39
      %p250 = pneg %p36
      %p251 = pneg %p60
      %p252 = pneg %p57
      %p253 = pneg %p81
      %p254 = pneg %p78
      %p255 = pneg %p102
      %p256 = pneg %p99
      %p257 = pneg %p123
      %p258 = pneg %p120
      %p259 = pneg %p144
      %p260 = pneg %p141
      %p261 = pneg %p165
      %p262 = pneg %p162
      %p263 = pneg %p191
      %p264 = pneg %p188
      %s265 = smul.u32 32, %s18
      %p266 = scmp.lt.s32.totalorder %s265, 63
      %s267 = scalar_select %p266, %s265, 63
      %s268 = smul.addr %s267, 8
      %s269 = scalar_lea.vmem %s7, %s268
      %s270 = smul.u32 32, %s18
      %p271 = scmp.lt.s32.totalorder %s270, 63
      %s272 = scalar_select %p271, %s270, 63
      %s273 = smul.addr %s272, 8
      %s274 = scalar_lea.vmem %s0, %s273
      %s275 = smul.u32 32, %s18
      %s276 = smul.u32 32, %s18
      %p277 = scmp.lt.s32.totalorder %s276, 63
      %s278 = scalar_select %p277, %s276, 63
      %s279 = smul.addr %s278, 8
      %s280 = scalar_lea.vmem %s7, %s279
      %s281 = smul.u32 32, %s18
      %v282 = vld [vmem:[%s274] sm:$0xff]
      %v283 = vld [vmem:[%s274 + $0x8] sm:$0xff]
      %v284 = vld [vmem:[%s274 + $0x10] sm:$0xff]
      %v285 = vld [vmem:[%s274 + $0x18] sm:$0xff]
      %v286 = vld [vmem:[%s274 + $0x20] sm:$0xff]
      %v287 = vld [vmem:[%s274 + $0x28] sm:$0xff]
      %v288 = vld [vmem:[%s274 + $0x30] sm:$0xff]
      %v289 = vld [vmem:[%s274 + $0x38] sm:$0xff]
      %v290 = vld [vmem:[%s274 + $0x40] sm:$0xff]
      %v291 = vld [vmem:[%s274 + $0x48] sm:$0xff]
      %v292 = vld [vmem:[%s274 + $0x50] sm:$0xff]
      %v293 = vld [vmem:[%s274 + $0x58] sm:$0xff]
      %v294 = vld [vmem:[%s274 + $0x60] sm:$0xff]
      %v295 = vld [vmem:[%s274 + $0x68] sm:$0xff]
      %v296 = vld [vmem:[%s274 + $0x70] sm:$0xff]
      %v297 = vld [vmem:[%s274 + $0x78] sm:$0xff]
      %v298 = vld [vmem:[%s274 + $0x80] sm:$0xff]
      %v299 = vld [vmem:[%s274 + $0x88] sm:$0xff]
      %v300 = vld [vmem:[%s274 + $0x90] sm:$0xff]
      %v301 = vld [vmem:[%s274 + $0x98] sm:$0xff]
      %v302 = vld [vmem:[%s274 + $0xa0] sm:$0xff]
      %v303 = vld [vmem:[%s274 + $0xa8] sm:$0xff]
      %v304 = vld [vmem:[%s274 + $0xb0] sm:$0xff]
      %v305 = vld [vmem:[%s274 + $0xb8] sm:$0xff]
      %v306 = vld [vmem:[%s274 + $0xc0] sm:$0xff]
      %v307 = vld [vmem:[%s274 + $0xc8] sm:$0xff]
      %v308 = vld [vmem:[%s274 + $0xd0] sm:$0xff]
      %v309 = vld [vmem:[%s274 + $0xd8] sm:$0xff]
      %v310 = vld [vmem:[%s274 + $0xe0] sm:$0xff]
      %v311 = vld [vmem:[%s274 + $0xe8] sm:$0xff]
      %v312 = vld [vmem:[%s274 + $0xf0] sm:$0xff]
      %v313 = vld [vmem:[%s274 + $0xf8] sm:$0xff]
      %v314 = vld [vmem:[%s1] sm:$0xf]
      %v315 = vld [vmem:[%s2] sm:$0x1]
      %317 = vset.pattern.permute.xlu0 0
      %318 = vperm.xlu0 %317, %v282
      %v319 = vpop.permute.xlu0 %318
      %322 = vset.pattern.permute.xlu0 0
      %323 = vperm.xlu0 %322, %v283
      %v324 = vpop.permute.xlu0 %323
      %327 = vset.pattern.permute.xlu0 0
      %328 = vperm.xlu0 %327, %v284
      %v329 = vpop.permute.xlu0 %328
      %332 = vset.pattern.permute.xlu0 0
      %333 = vperm.xlu0 %332, %v285
      %v334 = vpop.permute.xlu0 %333
      %337 = vset.pattern.permute.xlu0 0
      %338 = vperm.xlu0 %337, %v286
      %v339 = vpop.permute.xlu0 %338
      %342 = vset.pattern.permute.xlu0 0
      %343 = vperm.xlu0 %342, %v287
      %v344 = vpop.permute.xlu0 %343
      %347 = vset.pattern.permute.xlu0 0
      %348 = vperm.xlu0 %347, %v288
      %v349 = vpop.permute.xlu0 %348
      %352 = vset.pattern.permute.xlu0 0
      %353 = vperm.xlu0 %352, %v289
      %v354 = vpop.permute.xlu0 %353
      %357 = vset.pattern.permute.xlu0 0
      %358 = vperm.xlu0 %357, %v290
      %v359 = vpop.permute.xlu0 %358
      %362 = vset.pattern.permute.xlu0 0
      %363 = vperm.xlu0 %362, %v291
      %v364 = vpop.permute.xlu0 %363
      %367 = vset.pattern.permute.xlu0 0
      %368 = vperm.xlu0 %367, %v292
      %v369 = vpop.permute.xlu0 %368
      %372 = vset.pattern.permute.xlu0 0
      %373 = vperm.xlu0 %372, %v293
      %v374 = vpop.permute.xlu0 %373
      %377 = vset.pattern.permute.xlu0 0
      %378 = vperm.xlu0 %377, %v294
      %v379 = vpop.permute.xlu0 %378
      %382 = vset.pattern.permute.xlu0 0
      %383 = vperm.xlu0 %382, %v295
      %v384 = vpop.permute.xlu0 %383
      %387 = vset.pattern.permute.xlu0 0
      %388 = vperm.xlu0 %387, %v296
      %v389 = vpop.permute.xlu0 %388
      %392 = vset.pattern.permute.xlu0 0
      %393 = vperm.xlu0 %392, %v297
      %v394 = vpop.permute.xlu0 %393
      %397 = vset.pattern.permute.xlu0 0
      %398 = vperm.xlu0 %397, %v298
      %v399 = vpop.permute.xlu0 %398
      %402 = vset.pattern.permute.xlu0 0
      %403 = vperm.xlu0 %402, %v299
      %v404 = vpop.permute.xlu0 %403
      %407 = vset.pattern.permute.xlu0 0
      %408 = vperm.xlu0 %407, %v300
      %v409 = vpop.permute.xlu0 %408
      %412 = vset.pattern.permute.xlu0 0
      %413 = vperm.xlu0 %412, %v301
      %v414 = vpop.permute.xlu0 %413
      %417 = vset.pattern.permute.xlu0 0
      %418 = vperm.xlu0 %417, %v302
      %v419 = vpop.permute.xlu0 %418
      %422 = vset.pattern.permute.xlu0 0
      %423 = vperm.xlu0 %422, %v303
      %v424 = vpop.permute.xlu0 %423
      %427 = vset.pattern.permute.xlu0 0
      %428 = vperm.xlu0 %427, %v304
      %v429 = vpop.permute.xlu0 %428
      %432 = vset.pattern.permute.xlu0 0
      %433 = vperm.xlu0 %432, %v305
      %v434 = vpop.permute.xlu0 %433
      %437 = vset.pattern.permute.xlu0 0
      %438 = vperm.xlu0 %437, %v306
      %v439 = vpop.permute.xlu0 %438
      %442 = vset.pattern.permute.xlu0 0
      %443 = vperm.xlu0 %442, %v307
      %v444 = vpop.permute.xlu0 %443
      %447 = vset.pattern.permute.xlu0 0
      %448 = vperm.xlu0 %447, %v308
      %v449 = vpop.permute.xlu0 %448
      %452 = vset.pattern.permute.xlu0 0
      %453 = vperm.xlu0 %452, %v309
      %v454 = vpop.permute.xlu0 %453
      %457 = vset.pattern.permute.xlu0 0
      %458 = vperm.xlu0 %457, %v310
      %v459 = vpop.permute.xlu0 %458
      %462 = vset.pattern.permute.xlu0 0
      %463 = vperm.xlu0 %462, %v311
      %v464 = vpop.permute.xlu0 %463
      %467 = vset.pattern.permute.xlu0 0
      %468 = vperm.xlu0 %467, %v312
      %v469 = vpop.permute.xlu0 %468
      %472 = vset.pattern.permute.xlu0 0
      %473 = vperm.xlu0 %472, %v313
      %v474 = vpop.permute.xlu0 %473
      %v476 = vlaneseq
      %v477 = vshrl.u32 %v476, 7
      %v478 = vsub.s32 0, %v477
      %v479 = vrot.slane %v314, %v478
      %v480 = vmul.f32 %v319, %v479
      %v481 = vmul.f32 %v324, %v479
      %v482 = vmul.f32 %v329, %v479
      %v483 = vmul.f32 %v334, %v479
      %v484 = vmul.f32 %v339, %v479
      %v485 = vmul.f32 %v344, %v479
      %v486 = vmul.f32 %v349, %v479
      %v487 = vmul.f32 %v354, %v479
      %v488 = vmul.f32 %v359, %v479
      %v489 = vmul.f32 %v364, %v479
      %v490 = vmul.f32 %v369, %v479
      %v491 = vmul.f32 %v374, %v479
      %v492 = vmul.f32 %v379, %v479
      %v493 = vmul.f32 %v384, %v479
      %v494 = vmul.f32 %v389, %v479
      %v495 = vmul.f32 %v394, %v479
      %v496 = vmul.f32 %v399, %v479
      %v497 = vmul.f32 %v404, %v479
      %v498 = vmul.f32 %v409, %v479
      %v499 = vmul.f32 %v414, %v479
      %v500 = vmul.f32 %v419, %v479
      %v501 = vmul.f32 %v424, %v479
      %v502 = vmul.f32 %v429, %v479
      %v503 = vmul.f32 %v434, %v479
      %v504 = vmul.f32 %v439, %v479
      %v505 = vmul.f32 %v444, %v479
      %v506 = vmul.f32 %v449, %v479
      %v507 = vmul.f32 %v454, %v479
      %v508 = vmul.f32 %v459, %v479
      %v509 = vmul.f32 %v464, %v479
      %v510 = vmul.f32 %v469, %v479
      %v511 = vmul.f32 %v474, %v479
      %v513 = vlaneseq
      %v514 = vshrl.u32 %v513, 7
      %v515 = vsub.s32 0, %v514
      %v516 = vrot.slane %v315, %v515
      %v518 = vadd.f32 %v516, %v480
      %v519 = vadd.f32 %v516, %v481
      %v520 = vadd.f32 %v516, %v482
      %v521 = vadd.f32 %v516, %v483
      %v522 = vadd.f32 %v516, %v484
      %v523 = vadd.f32 %v516, %v485
      %v524 = vadd.f32 %v516, %v486
      %v525 = vadd.f32 %v516, %v487
      %v526 = vadd.f32 %v516, %v488
      %v527 = vadd.f32 %v516, %v489
      %v528 = vadd.f32 %v516, %v490
      %v529 = vadd.f32 %v516, %v491
      %v530 = vadd.f32 %v516, %v492
      %v531 = vadd.f32 %v516, %v493
      %v532 = vadd.f32 %v516, %v494
      %v533 = vadd.f32 %v516, %v495
      %v534 = vadd.f32 %v516, %v496
      %v535 = vadd.f32 %v516, %v497
      %v536 = vadd.f32 %v516, %v498
      %v537 = vadd.f32 %v516, %v499
      %v538 = vadd.f32 %v516, %v500
      %v539 = vadd.f32 %v516, %v501
      %v540 = vadd.f32 %v516, %v502
      %v541 = vadd.f32 %v516, %v503
      %v542 = vadd.f32 %v516, %v504
      %v543 = vadd.f32 %v516, %v505
      %v544 = vadd.f32 %v516, %v506
      %v545 = vadd.f32 %v516, %v507
      %v546 = vadd.f32 %v516, %v508
      %v547 = vadd.f32 %v516, %v509
      %v548 = vadd.f32 %v516, %v510
      %v549 = vadd.f32 %v516, %v511
      %550 = vset.pattern.permute.xlu0 1
      %551 = vperm.xlu0 %550, %v282
      %v552 = vpop.permute.xlu0 %551
      %554 = vset.pattern.permute.xlu0 1
      %555 = vperm.xlu0 %554, %v283
      %v556 = vpop.permute.xlu0 %555
      %558 = vset.pattern.permute.xlu0 1
      %559 = vperm.xlu0 %558, %v284
      %v560 = vpop.permute.xlu0 %559
      %562 = vset.pattern.permute.xlu0 1
      %563 = vperm.xlu0 %562, %v285
      %v564 = vpop.permute.xlu0 %563
      %566 = vset.pattern.permute.xlu0 1
      %567 = vperm.xlu0 %566, %v286
      %v568 = vpop.permute.xlu0 %567
      %570 = vset.pattern.permute.xlu0 1
      %571 = vperm.xlu0 %570, %v287
      %v572 = vpop.permute.xlu0 %571
      %574 = vset.pattern.permute.xlu0 1
      %575 = vperm.xlu0 %574, %v288
      %v576 = vpop.permute.xlu0 %575
      %578 = vset.pattern.permute.xlu0 1
      %579 = vperm.xlu0 %578, %v289
      %v580 = vpop.permute.xlu0 %579
      %582 = vset.pattern.permute.xlu0 1
      %583 = vperm.xlu0 %582, %v290
      %v584 = vpop.permute.xlu0 %583
      %586 = vset.pattern.permute.xlu0 1
      %587 = vperm.xlu0 %586, %v291
      %v588 = vpop.permute.xlu0 %587
      %590 = vset.pattern.permute.xlu0 1
      %591 = vperm.xlu0 %590, %v292
      %v592 = vpop.permute.xlu0 %591
      %594 = vset.pattern.permute.xlu0 1
      %595 = vperm.xlu0 %594, %v293
      %v596 = vpop.permute.xlu0 %595
      %598 = vset.pattern.permute.xlu0 1
      %599 = vperm.xlu0 %598, %v294
      %v600 = vpop.permute.xlu0 %599
      %602 = vset.pattern.permute.xlu0 1
      %603 = vperm.xlu0 %602, %v295
      %v604 = vpop.permute.xlu0 %603
      %606 = vset.pattern.permute.xlu0 1
      %607 = vperm.xlu0 %606, %v296
      %v608 = vpop.permute.xlu0 %607
      %610 = vset.pattern.permute.xlu0 1
      %611 = vperm.xlu0 %610, %v297
      %v612 = vpop.permute.xlu0 %611
      %614 = vset.pattern.permute.xlu0 1
      %615 = vperm.xlu0 %614, %v298
      %v616 = vpop.permute.xlu0 %615
      %618 = vset.pattern.permute.xlu0 1
      %619 = vperm.xlu0 %618, %v299
      %v620 = vpop.permute.xlu0 %619
      %622 = vset.pattern.permute.xlu0 1
      %623 = vperm.xlu0 %622, %v300
      %v624 = vpop.permute.xlu0 %623
      %626 = vset.pattern.permute.xlu0 1
      %627 = vperm.xlu0 %626, %v301
      %v628 = vpop.permute.xlu0 %627
      %630 = vset.pattern.permute.xlu0 1
      %631 = vperm.xlu0 %630, %v302
      %v632 = vpop.permute.xlu0 %631
      %634 = vset.pattern.permute.xlu0 1
      %635 = vperm.xlu0 %634, %v303
      %v636 = vpop.permute.xlu0 %635
      %638 = vset.pattern.permute.xlu0 1
      %639 = vperm.xlu0 %638, %v304
      %v640 = vpop.permute.xlu0 %639
      %642 = vset.pattern.permute.xlu0 1
      %643 = vperm.xlu0 %642, %v305
      %v644 = vpop.permute.xlu0 %643
      %646 = vset.pattern.permute.xlu0 1
      %647 = vperm.xlu0 %646, %v306
      %v648 = vpop.permute.xlu0 %647
      %650 = vset.pattern.permute.xlu0 1
      %651 = vperm.xlu0 %650, %v307
      %v652 = vpop.permute.xlu0 %651
      %654 = vset.pattern.permute.xlu0 1
      %655 = vperm.xlu0 %654, %v308
      %v656 = vpop.permute.xlu0 %655
      %658 = vset.pattern.permute.xlu0 1
      %659 = vperm.xlu0 %658, %v309
      %v660 = vpop.permute.xlu0 %659
      %662 = vset.pattern.permute.xlu0 1
      %663 = vperm.xlu0 %662, %v310
      %v664 = vpop.permute.xlu0 %663
      %666 = vset.pattern.permute.xlu0 1
      %667 = vperm.xlu0 %666, %v311
      %v668 = vpop.permute.xlu0 %667
      %670 = vset.pattern.permute.xlu0 1
      %671 = vperm.xlu0 %670, %v312
      %v672 = vpop.permute.xlu0 %671
      %674 = vset.pattern.permute.xlu0 1
      %675 = vperm.xlu0 %674, %v313
      %v676 = vpop.permute.xlu0 %675
      %v678 = vlaneseq
      %v679 = vshrl.u32 %v678, 7
      %v680 = vsub.s32 1, %v679
      %v681 = vrot.slane %v314, %v680
      %v682 = vmul.f32 %v552, %v681
      %v683 = vmul.f32 %v556, %v681
      %v684 = vmul.f32 %v560, %v681
      %v685 = vmul.f32 %v564, %v681
      %v686 = vmul.f32 %v568, %v681
      %v687 = vmul.f32 %v572, %v681
      %v688 = vmul.f32 %v576, %v681
      %v689 = vmul.f32 %v580, %v681
      %v690 = vmul.f32 %v584, %v681
      %v691 = vmul.f32 %v588, %v681
      %v692 = vmul.f32 %v592, %v681
      %v693 = vmul.f32 %v596, %v681
      %v694 = vmul.f32 %v600, %v681
      %v695 = vmul.f32 %v604, %v681
      %v696 = vmul.f32 %v608, %v681
      %v697 = vmul.f32 %v612, %v681
      %v698 = vmul.f32 %v616, %v681
      %v699 = vmul.f32 %v620, %v681
      %v700 = vmul.f32 %v624, %v681
      %v701 = vmul.f32 %v628, %v681
      %v702 = vmul.f32 %v632, %v681
      %v703 = vmul.f32 %v636, %v681
      %v704 = vmul.f32 %v640, %v681
      %v705 = vmul.f32 %v644, %v681
      %v706 = vmul.f32 %v648, %v681
      %v707 = vmul.f32 %v652, %v681
      %v708 = vmul.f32 %v656, %v681
      %v709 = vmul.f32 %v660, %v681
      %v710 = vmul.f32 %v664, %v681
      %v711 = vmul.f32 %v668, %v681
      %v712 = vmul.f32 %v672, %v681
      %v713 = vmul.f32 %v676, %v681
      %v714 = vadd.f32 %v518, %v682
      %v715 = vadd.f32 %v519, %v683
      %v716 = vadd.f32 %v520, %v684
      %v717 = vadd.f32 %v521, %v685
      %v718 = vadd.f32 %v522, %v686
      %v719 = vadd.f32 %v523, %v687
      %v720 = vadd.f32 %v524, %v688
      %v721 = vadd.f32 %v525, %v689
      %v722 = vadd.f32 %v526, %v690
      %v723 = vadd.f32 %v527, %v691
      %v724 = vadd.f32 %v528, %v692
      %v725 = vadd.f32 %v529, %v693
      %v726 = vadd.f32 %v530, %v694
      %v727 = vadd.f32 %v531, %v695
      %v728 = vadd.f32 %v532, %v696
      %v729 = vadd.f32 %v533, %v697
      %v730 = vadd.f32 %v534, %v698
      %v731 = vadd.f32 %v535, %v699
      %v732 = vadd.f32 %v536, %v700
      %v733 = vadd.f32 %v537, %v701
      %v734 = vadd.f32 %v538, %v702
      %v735 = vadd.f32 %v539, %v703
      %v736 = vadd.f32 %v540, %v704
      %v737 = vadd.f32 %v541, %v705
      %v738 = vadd.f32 %v542, %v706
      %v739 = vadd.f32 %v543, %v707
      %v740 = vadd.f32 %v544, %v708
      %v741 = vadd.f32 %v545, %v709
      %v742 = vadd.f32 %v546, %v710
      %v743 = vadd.f32 %v547, %v711
      %v744 = vadd.f32 %v548, %v712
      %v745 = vadd.f32 %v549, %v713
      %746 = vset.pattern.permute.xlu0 2
      %747 = vperm.xlu0 %746, %v282
      %v748 = vpop.permute.xlu0 %747
      %750 = vset.pattern.permute.xlu0 2
      %751 = vperm.xlu0 %750, %v283
      %v752 = vpop.permute.xlu0 %751
      %754 = vset.pattern.permute.xlu0 2
      %755 = vperm.xlu0 %754, %v284
      %v756 = vpop.permute.xlu0 %755
      %758 = vset.pattern.permute.xlu0 2
      %759 = vperm.xlu0 %758, %v285
      %v760 = vpop.permute.xlu0 %759
      %762 = vset.pattern.permute.xlu0 2
      %763 = vperm.xlu0 %762, %v286
      %v764 = vpop.permute.xlu0 %763
      %766 = vset.pattern.permute.xlu0 2
      %767 = vperm.xlu0 %766, %v287
      %v768 = vpop.permute.xlu0 %767
      %770 = vset.pattern.permute.xlu0 2
      %771 = vperm.xlu0 %770, %v288
      %v772 = vpop.permute.xlu0 %771
      %774 = vset.pattern.permute.xlu0 2
      %775 = vperm.xlu0 %774, %v289
      %v776 = vpop.permute.xlu0 %775
      %778 = vset.pattern.permute.xlu0 2
      %779 = vperm.xlu0 %778, %v290
      %v780 = vpop.permute.xlu0 %779
      %782 = vset.pattern.permute.xlu0 2
      %783 = vperm.xlu0 %782, %v291
      %v784 = vpop.permute.xlu0 %783
      %786 = vset.pattern.permute.xlu0 2
      %787 = vperm.xlu0 %786, %v292
      %v788 = vpop.permute.xlu0 %787
      %790 = vset.pattern.permute.xlu0 2
      %791 = vperm.xlu0 %790, %v293
      %v792 = vpop.permute.xlu0 %791
      %794 = vset.pattern.permute.xlu0 2
      %795 = vperm.xlu0 %794, %v294
      %v796 = vpop.permute.xlu0 %795
      %798 = vset.pattern.permute.xlu0 2
      %799 = vperm.xlu0 %798, %v295
      %v800 = vpop.permute.xlu0 %799
      %802 = vset.pattern.permute.xlu0 2
      %803 = vperm.xlu0 %802, %v296
      %v804 = vpop.permute.xlu0 %803
      %806 = vset.pattern.permute.xlu0 2
      %807 = vperm.xlu0 %806, %v297
      %v808 = vpop.permute.xlu0 %807
      %810 = vset.pattern.permute.xlu0 2
      %811 = vperm.xlu0 %810, %v298
      %v812 = vpop.permute.xlu0 %811
      %814 = vset.pattern.permute.xlu0 2
      %815 = vperm.xlu0 %814, %v299
      %v816 = vpop.permute.xlu0 %815
      %818 = vset.pattern.permute.xlu0 2
      %819 = vperm.xlu0 %818, %v300
      %v820 = vpop.permute.xlu0 %819
      %822 = vset.pattern.permute.xlu0 2
      %823 = vperm.xlu0 %822, %v301
      %v824 = vpop.permute.xlu0 %823
      %826 = vset.pattern.permute.xlu0 2
      %827 = vperm.xlu0 %826, %v302
      %v828 = vpop.permute.xlu0 %827
      %830 = vset.pattern.permute.xlu0 2
      %831 = vperm.xlu0 %830, %v303
      %v832 = vpop.permute.xlu0 %831
      %834 = vset.pattern.permute.xlu0 2
      %835 = vperm.xlu0 %834, %v304
      %v836 = vpop.permute.xlu0 %835
      %838 = vset.pattern.permute.xlu0 2
      %839 = vperm.xlu0 %838, %v305
      %v840 = vpop.permute.xlu0 %839
      %842 = vset.pattern.permute.xlu0 2
      %843 = vperm.xlu0 %842, %v306
      %v844 = vpop.permute.xlu0 %843
      %846 = vset.pattern.permute.xlu0 2
      %847 = vperm.xlu0 %846, %v307
      %v848 = vpop.permute.xlu0 %847
      %850 = vset.pattern.permute.xlu0 2
      %851 = vperm.xlu0 %850, %v308
      %v852 = vpop.permute.xlu0 %851
      %854 = vset.pattern.permute.xlu0 2
      %855 = vperm.xlu0 %854, %v309
      %v856 = vpop.permute.xlu0 %855
      %858 = vset.pattern.permute.xlu0 2
      %859 = vperm.xlu0 %858, %v310
      %v860 = vpop.permute.xlu0 %859
      %862 = vset.pattern.permute.xlu0 2
      %863 = vperm.xlu0 %862, %v311
      %v864 = vpop.permute.xlu0 %863
      %866 = vset.pattern.permute.xlu0 2
      %867 = vperm.xlu0 %866, %v312
      %v868 = vpop.permute.xlu0 %867
      %870 = vset.pattern.permute.xlu0 2
      %871 = vperm.xlu0 %870, %v313
      %v872 = vpop.permute.xlu0 %871
      %v874 = vlaneseq
      %v875 = vshrl.u32 %v874, 7
      %v876 = vsub.s32 2, %v875
      %v877 = vrot.slane %v314, %v876
      %v878 = vmul.f32 %v748, %v877
      %v879 = vmul.f32 %v752, %v877
      %v880 = vmul.f32 %v756, %v877
      %v881 = vmul.f32 %v760, %v877
      %v882 = vmul.f32 %v764, %v877
      %v883 = vmul.f32 %v768, %v877
      %v884 = vmul.f32 %v772, %v877
      %v885 = vmul.f32 %v776, %v877
      %v886 = vmul.f32 %v780, %v877
      %v887 = vmul.f32 %v784, %v877
      %v888 = vmul.f32 %v788, %v877
      %v889 = vmul.f32 %v792, %v877
      %v890 = vmul.f32 %v796, %v877
      %v891 = vmul.f32 %v800, %v877
      %v892 = vmul.f32 %v804, %v877
      %v893 = vmul.f32 %v808, %v877
      %v894 = vmul.f32 %v812, %v877
      %v895 = vmul.f32 %v816, %v877
      %v896 = vmul.f32 %v820, %v877
      %v897 = vmul.f32 %v824, %v877
      %v898 = vmul.f32 %v828, %v877
      %v899 = vmul.f32 %v832, %v877
      %v900 = vmul.f32 %v836, %v877
      %v901 = vmul.f32 %v840, %v877
      %v902 = vmul.f32 %v844, %v877
      %v903 = vmul.f32 %v848, %v877
      %v904 = vmul.f32 %v852, %v877
      %v905 = vmul.f32 %v856, %v877
      %v906 = vmul.f32 %v860, %v877
      %v907 = vmul.f32 %v864, %v877
      %v908 = vmul.f32 %v868, %v877
      %v909 = vmul.f32 %v872, %v877
      %v910 = vadd.f32 %v714, %v878
      %v911 = vadd.f32 %v715, %v879
      %v912 = vadd.f32 %v716, %v880
      %v913 = vadd.f32 %v717, %v881
      %v914 = vadd.f32 %v718, %v882
      %v915 = vadd.f32 %v719, %v883
      %v916 = vadd.f32 %v720, %v884
      %v917 = vadd.f32 %v721, %v885
      %v918 = vadd.f32 %v722, %v886
      %v919 = vadd.f32 %v723, %v887
      %v920 = vadd.f32 %v724, %v888
      %v921 = vadd.f32 %v725, %v889
      %v922 = vadd.f32 %v726, %v890
      %v923 = vadd.f32 %v727, %v891
      %v924 = vadd.f32 %v728, %v892
      %v925 = vadd.f32 %v729, %v893
      %v926 = vadd.f32 %v730, %v894
      %v927 = vadd.f32 %v731, %v895
      %v928 = vadd.f32 %v732, %v896
      %v929 = vadd.f32 %v733, %v897
      %v930 = vadd.f32 %v734, %v898
      %v931 = vadd.f32 %v735, %v899
      %v932 = vadd.f32 %v736, %v900
      %v933 = vadd.f32 %v737, %v901
      %v934 = vadd.f32 %v738, %v902
      %v935 = vadd.f32 %v739, %v903
      %v936 = vadd.f32 %v740, %v904
      %v937 = vadd.f32 %v741, %v905
      %v938 = vadd.f32 %v742, %v906
      %v939 = vadd.f32 %v743, %v907
      %v940 = vadd.f32 %v744, %v908
      %v941 = vadd.f32 %v745, %v909
      %942 = vset.pattern.permute.xlu0 3
      %943 = vperm.xlu0 %942, %v282
      %v944 = vpop.permute.xlu0 %943
      %946 = vset.pattern.permute.xlu0 3
      %947 = vperm.xlu0 %946, %v283
      %v948 = vpop.permute.xlu0 %947
      %950 = vset.pattern.permute.xlu0 3
      %951 = vperm.xlu0 %950, %v284
      %v952 = vpop.permute.xlu0 %951
      %954 = vset.pattern.permute.xlu0 3
      %955 = vperm.xlu0 %954, %v285
      %v956 = vpop.permute.xlu0 %955
      %958 = vset.pattern.permute.xlu0 3
      %959 = vperm.xlu0 %958, %v286
      %v960 = vpop.permute.xlu0 %959
      %962 = vset.pattern.permute.xlu0 3
      %963 = vperm.xlu0 %962, %v287
      %v964 = vpop.permute.xlu0 %963
      %966 = vset.pattern.permute.xlu0 3
      %967 = vperm.xlu0 %966, %v288
      %v968 = vpop.permute.xlu0 %967
      %970 = vset.pattern.permute.xlu0 3
      %971 = vperm.xlu0 %970, %v289
      %v972 = vpop.permute.xlu0 %971
      %974 = vset.pattern.permute.xlu0 3
      %975 = vperm.xlu0 %974, %v290
      %v976 = vpop.permute.xlu0 %975
      %978 = vset.pattern.permute.xlu0 3
      %979 = vperm.xlu0 %978, %v291
      %v980 = vpop.permute.xlu0 %979
      %982 = vset.pattern.permute.xlu0 3
      %983 = vperm.xlu0 %982, %v292
      %v984 = vpop.permute.xlu0 %983
      %986 = vset.pattern.permute.xlu0 3
      %987 = vperm.xlu0 %986, %v293
      %v988 = vpop.permute.xlu0 %987
      %990 = vset.pattern.permute.xlu0 3
      %991 = vperm.xlu0 %990, %v294
      %v992 = vpop.permute.xlu0 %991
      %994 = vset.pattern.permute.xlu0 3
      %995 = vperm.xlu0 %994, %v295
      %v996 = vpop.permute.xlu0 %995
      %998 = vset.pattern.permute.xlu0 3
      %999 = vperm.xlu0 %998, %v296
      %v1000 = vpop.permute.xlu0 %999
      %1002 = vset.pattern.permute.xlu0 3
      %1003 = vperm.xlu0 %1002, %v297
      %v1004 = vpop.permute.xlu0 %1003
      %1006 = vset.pattern.permute.xlu0 3
      %1007 = vperm.xlu0 %1006, %v298
      %v1008 = vpop.permute.xlu0 %1007
      %1010 = vset.pattern.permute.xlu0 3
      %1011 = vperm.xlu0 %1010, %v299
      %v1012 = vpop.permute.xlu0 %1011
      %1014 = vset.pattern.permute.xlu0 3
      %1015 = vperm.xlu0 %1014, %v300
      %v1016 = vpop.permute.xlu0 %1015
      %1018 = vset.pattern.permute.xlu0 3
      %1019 = vperm.xlu0 %1018, %v301
      %v1020 = vpop.permute.xlu0 %1019
      %1022 = vset.pattern.permute.xlu0 3
      %1023 = vperm.xlu0 %1022, %v302
      %v1024 = vpop.permute.xlu0 %1023
      %1026 = vset.pattern.permute.xlu0 3
      %1027 = vperm.xlu0 %1026, %v303
      %v1028 = vpop.permute.xlu0 %1027
      %1030 = vset.pattern.permute.xlu0 3
      %1031 = vperm.xlu0 %1030, %v304
      %v1032 = vpop.permute.xlu0 %1031
      %1034 = vset.pattern.permute.xlu0 3
      %1035 = vperm.xlu0 %1034, %v305
      %v1036 = vpop.permute.xlu0 %1035
      %1038 = vset.pattern.permute.xlu0 3
      %1039 = vperm.xlu0 %1038, %v306
      %v1040 = vpop.permute.xlu0 %1039
      %1042 = vset.pattern.permute.xlu0 3
      %1043 = vperm.xlu0 %1042, %v307
      %v1044 = vpop.permute.xlu0 %1043
      %1046 = vset.pattern.permute.xlu0 3
      %1047 = vperm.xlu0 %1046, %v308
      %v1048 = vpop.permute.xlu0 %1047
      %1050 = vset.pattern.permute.xlu0 3
      %1051 = vperm.xlu0 %1050, %v309
      %v1052 = vpop.permute.xlu0 %1051
      %1054 = vset.pattern.permute.xlu0 3
      %1055 = vperm.xlu0 %1054, %v310
      %v1056 = vpop.permute.xlu0 %1055
      %1058 = vset.pattern.permute.xlu0 3
      %1059 = vperm.xlu0 %1058, %v311
      %v1060 = vpop.permute.xlu0 %1059
      %1062 = vset.pattern.permute.xlu0 3
      %1063 = vperm.xlu0 %1062, %v312
      %v1064 = vpop.permute.xlu0 %1063
      %1066 = vset.pattern.permute.xlu0 3
      %1067 = vperm.xlu0 %1066, %v313
      %v1068 = vpop.permute.xlu0 %1067
      %v1070 = vlaneseq
      %v1071 = vshrl.u32 %v1070, 7
      %v1072 = vsub.s32 3, %v1071
      %v1073 = vrot.slane %v314, %v1072
      %v1074 = vmul.f32 %v944, %v1073
      %v1075 = vmul.f32 %v948, %v1073
      %v1076 = vmul.f32 %v952, %v1073
      %v1077 = vmul.f32 %v956, %v1073
      %v1078 = vmul.f32 %v960, %v1073
      %v1079 = vmul.f32 %v964, %v1073
      %v1080 = vmul.f32 %v968, %v1073
      %v1081 = vmul.f32 %v972, %v1073
      %v1082 = vmul.f32 %v976, %v1073
      %v1083 = vmul.f32 %v980, %v1073
      %v1084 = vmul.f32 %v984, %v1073
      %v1085 = vmul.f32 %v988, %v1073
      %v1086 = vmul.f32 %v992, %v1073
      %v1087 = vmul.f32 %v996, %v1073
      %v1088 = vmul.f32 %v1000, %v1073
      %v1089 = vmul.f32 %v1004, %v1073
      %v1090 = vmul.f32 %v1008, %v1073
      %v1091 = vmul.f32 %v1012, %v1073
      %v1092 = vmul.f32 %v1016, %v1073
      %v1093 = vmul.f32 %v1020, %v1073
      %v1094 = vmul.f32 %v1024, %v1073
      %v1095 = vmul.f32 %v1028, %v1073
      %v1096 = vmul.f32 %v1032, %v1073
      %v1097 = vmul.f32 %v1036, %v1073
      %v1098 = vmul.f32 %v1040, %v1073
      %v1099 = vmul.f32 %v1044, %v1073
      %v1100 = vmul.f32 %v1048, %v1073
      %v1101 = vmul.f32 %v1052, %v1073
      %v1102 = vmul.f32 %v1056, %v1073
      %v1103 = vmul.f32 %v1060, %v1073
      %v1104 = vmul.f32 %v1064, %v1073
      %v1105 = vmul.f32 %v1068, %v1073
      %v1106 = vadd.f32 %v910, %v1074
      %v1107 = vadd.f32 %v911, %v1075
      %v1108 = vadd.f32 %v912, %v1076
      %v1109 = vadd.f32 %v913, %v1077
      %v1110 = vadd.f32 %v914, %v1078
      %v1111 = vadd.f32 %v915, %v1079
      %v1112 = vadd.f32 %v916, %v1080
      %v1113 = vadd.f32 %v917, %v1081
      %v1114 = vadd.f32 %v918, %v1082
      %v1115 = vadd.f32 %v919, %v1083
      %v1116 = vadd.f32 %v920, %v1084
      %v1117 = vadd.f32 %v921, %v1085
      %v1118 = vadd.f32 %v922, %v1086
      %v1119 = vadd.f32 %v923, %v1087
      %v1120 = vadd.f32 %v924, %v1088
      %v1121 = vadd.f32 %v925, %v1089
      %v1122 = vadd.f32 %v926, %v1090
      %v1123 = vadd.f32 %v927, %v1091
      %v1124 = vadd.f32 %v928, %v1092
      %v1125 = vadd.f32 %v929, %v1093
      %v1126 = vadd.f32 %v930, %v1094
      %v1127 = vadd.f32 %v931, %v1095
      %v1128 = vadd.f32 %v932, %v1096
      %v1129 = vadd.f32 %v933, %v1097
      %v1130 = vadd.f32 %v934, %v1098
      %v1131 = vadd.f32 %v935, %v1099
      %v1132 = vadd.f32 %v936, %v1100
      %v1133 = vadd.f32 %v937, %v1101
      %v1134 = vadd.f32 %v938, %v1102
      %v1135 = vadd.f32 %v939, %v1103
      %v1136 = vadd.f32 %v940, %v1104
      %v1137 = vadd.f32 %v941, %v1105
      %v1138 = vtanh.pop %v1106
      %v1139 = vtanh.pop %v1107
      %v1140 = vtanh.pop %v1108
      %v1141 = vtanh.pop %v1109
      %v1142 = vtanh.pop %v1110
      %v1143 = vtanh.pop %v1111
      %v1144 = vtanh.pop %v1112
      %v1145 = vtanh.pop %v1113
      %v1146 = vtanh.pop %v1114
      %v1147 = vtanh.pop %v1115
      %v1148 = vtanh.pop %v1116
      %v1149 = vtanh.pop %v1117
      %v1150 = vtanh.pop %v1118
      %v1151 = vtanh.pop %v1119
      %v1152 = vtanh.pop %v1120
      %v1153 = vtanh.pop %v1121
      %v1154 = vtanh.pop %v1122
      %v1155 = vtanh.pop %v1123
      %v1156 = vtanh.pop %v1124
      %v1157 = vtanh.pop %v1125
      %v1158 = vtanh.pop %v1126
      %v1159 = vtanh.pop %v1127
      %v1160 = vtanh.pop %v1128
      %v1161 = vtanh.pop %v1129
      %v1162 = vtanh.pop %v1130
      %v1163 = vtanh.pop %v1131
      %v1164 = vtanh.pop %v1132
      %v1165 = vtanh.pop %v1133
      %v1166 = vtanh.pop %v1134
      %v1167 = vtanh.pop %v1135
      %v1168 = vtanh.pop %v1136
      %v1169 = vtanh.pop %v1137
      %v1170 = vld [vmem:[%s3] sm:$0xff]
      %v1171 = vld [vmem:[%s3 + $0x8] sm:$0xff]
      %v1172 = vld [vmem:[%s3 + $0x10] sm:$0xff]
      %v1173 = vld [vmem:[%s3 + $0x18] sm:$0xff]
      %v1174 = vld [vmem:[%s3 + $0x20] sm:$0xff]
      %v1175 = vld [vmem:[%s3 + $0x28] sm:$0xff]
      %v1176 = vld [vmem:[%s3 + $0x30] sm:$0xff]
      %v1177 = vld [vmem:[%s3 + $0x38] sm:$0xff]
      %v1178 = vld [vmem:[%s4] sm:$0x1]
      %v1180 = vlaneseq
      %v1181 = vshrl.u32 %v1180, 7
      %v1182 = vsub.s32 0, %v1181
      %v1183 = vrot.slane %v1178, %v1182
      %vm1185 = vcmask 523264
      %v1187 = vsel %vm1185, %v1138, 0
      %v1190 = vsel %vm1185, %v1139, 0
      %v1193 = vsel %vm1185, %v1140, 0
      %v1196 = vsel %vm1185, %v1141, 0
      %v1199 = vsel %vm1185, %v1142, 0
      %v1202 = vsel %vm1185, %v1143, 0
      %v1205 = vsel %vm1185, %v1144, 0
      %v1208 = vsel %vm1185, %v1145, 0
      %v1211 = vsel %vm1185, %v1146, 0
      %v1214 = vsel %vm1185, %v1147, 0
      %v1217 = vsel %vm1185, %v1148, 0
      %v1220 = vsel %vm1185, %v1149, 0
      %v1223 = vsel %vm1185, %v1150, 0
      %v1226 = vsel %vm1185, %v1151, 0
      %v1229 = vsel %vm1185, %v1152, 0
      %v1232 = vsel %vm1185, %v1153, 0
      %v1235 = vsel %vm1185, %v1154, 0
      %v1238 = vsel %vm1185, %v1155, 0
      %v1241 = vsel %vm1185, %v1156, 0
      %v1244 = vsel %vm1185, %v1157, 0
      %v1247 = vsel %vm1185, %v1158, 0
      %v1250 = vsel %vm1185, %v1159, 0
      %v1253 = vsel %vm1185, %v1160, 0
      %v1256 = vsel %vm1185, %v1161, 0
      %v1259 = vsel %vm1185, %v1162, 0
      %v1262 = vsel %vm1185, %v1163, 0
      %v1265 = vsel %vm1185, %v1164, 0
      %v1268 = vsel %vm1185, %v1165, 0
      %v1271 = vsel %vm1185, %v1166, 0
      %v1274 = vsel %vm1185, %v1167, 0
      %v1277 = vsel %vm1185, %v1168, 0
      %v1280 = vsel %vm1185, %v1169, 0
      %1282 = vmatprep.subr.mxu0 0.0
      %1283 = vmatpush1.msra.mxu0 %v1170
      %1284 = vmatprep.subr.mxu0 0.0
      %1285 = vmatpush1.msra.mxu0 %v1171
      %1286 = vmatprep.subr.mxu0 0.0
      %1287 = vmatpush1.msra.mxu0 %v1172
      %1288 = vmatprep.subr.mxu0 0.0
      %1289 = vmatpush1.msra.mxu0 %v1173
      %1290 = vmatprep.subr.mxu0 0.0
      %1291 = vmatpush1.msra.mxu0 %v1174
      %1292 = vmatprep.subr.mxu0 0.0
      %1293 = vmatpush1.msra.mxu0 %v1175
      %1294 = vmatprep.subr.mxu0 0.0
      %1295 = vmatpush1.msra.mxu0 %v1176
      %1296 = vmatprep.subr.mxu0 0.0
      %1297 = vmatpush1.msra.mxu0 %v1177
      %1298 = vmatprep.subr.mxu0 0.0
      %1299 = vmatpush1.msra.mxu0 0.0
      %1300 = vmatprep.subr.mxu0 0.0
      %1301 = vmatpush1.msra.mxu0 0.0
      %1302 = vmatprep.subr.mxu0 0.0
      %1303 = vmatpush1.msra.mxu0 0.0
      %1304 = vmatprep.subr.mxu0 0.0
      %1305 = vmatpush1.msra.mxu0 0.0
      %1306 = vmatprep.subr.mxu0 0.0
      %1307 = vmatpush1.msra.mxu0 0.0
      %1308 = vmatprep.subr.mxu0 0.0
      %1309 = vmatpush1.msra.mxu0 0.0
      %1310 = vmatprep.subr.mxu0 0.0
      %1311 = vmatpush1.msra.mxu0 0.0
      %1312 = vmatprep.subr.mxu0 0.0
      %1313 = vmatpush1.msra.mxu0 0.0
      %1314 = vmatprep.subr.mxu0 0.0
      %1315 = vmatpush1.msra.mxu0 0.0
      %1316 = vmatprep.subr.mxu0 0.0
      %1317 = vmatpush1.msra.mxu0 0.0
      %1318 = vmatprep.subr.mxu0 0.0
      %1319 = vmatpush1.msra.mxu0 0.0
      %1320 = vmatprep.subr.mxu0 0.0
      %1321 = vmatpush1.msra.mxu0 0.0
      %1322 = vmatprep.subr.mxu0 0.0
      %1323 = vmatpush1.msra.mxu0 0.0
      %1324 = vmatprep.subr.mxu0 0.0
      %1325 = vmatpush1.msra.mxu0 0.0
      %1326 = vmatprep.subr.mxu0 0.0
      %1327 = vmatpush1.msra.mxu0 0.0
      %1328 = vmatprep.subr.mxu0 0.0
      %1329 = vmatpush1.msra.mxu0 0.0
      %1330 = vmatprep.subr.mxu0 0.0
      %1331 = vmatpush1.msra.mxu0 0.0
      %1332 = vmatprep.subr.mxu0 0.0
      %1333 = vmatpush1.msra.mxu0 0.0
      %1334 = vmatprep.subr.mxu0 0.0
      %1335 = vmatpush1.msra.mxu0 0.0
      %1336 = vmatprep.subr.mxu0 0.0
      %1337 = vmatpush1.msra.mxu0 0.0
      %1338 = vmatprep.subr.mxu0 0.0
      %1339 = vmatpush1.msra.mxu0 0.0
      %1340 = vmatprep.subr.mxu0 0.0
      %1341 = vmatpush1.msra.mxu0 0.0
      %1342 = vmatprep.subr.mxu0 0.0
      %1343 = vmatpush1.msra.mxu0 0.0
      %1344 = vmatprep.subr.mxu0 0.0
      %1345 = vmatpush1.msra.mxu0 0.0
      %1346 = vmatprep.mubr.f32.mxu0 0.0
      %1347 = vmatmul.mubr.f32.gmra.mrb[0].mxu0 %v1187
      %v1348 = vpop.f32.mrb[0].mxu0
      %v1349 = vadd.f32 %v1183, %v1348
      %v1350 = vpop.f32.mrb[0].mxu0
      %1351 = vmatprep.mubr.f32.mxu0 0.0
      %1352 = vmatmul.mubr.f32.gmra.mrb[0].mxu0 %v1190
      %v1353 = vpop.f32.mrb[0].mxu0
      %v1354 = vadd.f32 %v1183, %v1353
      %v1355 = vpop.f32.mrb[0].mxu0
      %1356 = vmatprep.mubr.f32.mxu0 0.0
      %1357 = vmatmul.mubr.f32.gmra.mrb[0].mxu0 %v1193
      %v1358 = vpop.f32.mrb[0].mxu0
      %v1359 = vadd.f32 %v1183, %v1358
      %v1360 = vpop.f32.mrb[0].mxu0
      %1361 = vmatprep.mubr.f32.mxu0 0.0
      %1362 = vmatmul.mubr.f32.gmra.mrb[0].mxu0 %v1196
      %v1363 = vpop.f32.mrb[0].mxu0
      %v1364 = vadd.f32 %v1183, %v1363
      %v1365 = vpop.f32.mrb[0].mxu0
      %1366 = vmatprep.mubr.f32.mxu0 0.0
      %1367 = vmatmul.mubr.f32.gmra.mrb[0].mxu0 %v1199
      %v1368 = vpop.f32.mrb[0].mxu0
      %v1369 = vadd.f32 %v1183, %v1368
      %v1370 = vpop.f32.mrb[0].mxu0
      %1371 = vmatprep.mubr.f32.mxu0 0.0
      %1372 = vmatmul.mubr.f32.gmra.mrb[0].mxu0 %v1202
      %v1373 = vpop.f32.mrb[0].mxu0
      %v1374 = vadd.f32 %v1183, %v1373
      %v1375 = vpop.f32.mrb[0].mxu0
      %1376 = vmatprep.mubr.f32.mxu0 0.0
      %1377 = vmatmul.mubr.f32.gmra.mrb[0].mxu0 %v1205
      %v1378 = vpop.f32.mrb[0].mxu0
      %v1379 = vadd.f32 %v1183, %v1378
      %v1380 = vpop.f32.mrb[0].mxu0
      %1381 = vmatprep.mubr.f32.mxu0 0.0
      %1382 = vmatmul.mubr.f32.gmra.mrb[0].mxu0 %v1208
      %v1383 = vpop.f32.mrb[0].mxu0
      %v1384 = vadd.f32 %v1183, %v1383
      %v1385 = vpop.f32.mrb[0].mxu0
      %1386 = vmatprep.mubr.f32.mxu0 0.0
      %1387 = vmatmul.mubr.f32.gmra.mrb[0].mxu0 %v1211
      %v1388 = vpop.f32.mrb[0].mxu0
      %v1389 = vadd.f32 %v1183, %v1388
      %v1390 = vpop.f32.mrb[0].mxu0
      %1391 = vmatprep.mubr.f32.mxu0 0.0
      %1392 = vmatmul.mubr.f32.gmra.mrb[0].mxu0 %v1214
      %v1393 = vpop.f32.mrb[0].mxu0
      %v1394 = vadd.f32 %v1183, %v1393
      %v1395 = vpop.f32.mrb[0].mxu0
      %1396 = vmatprep.mubr.f32.mxu0 0.0
      %1397 = vmatmul.mubr.f32.gmra.mrb[0].mxu0 %v1217
      %v1398 = vpop.f32.mrb[0].mxu0
      %v1399 = vadd.f32 %v1183, %v1398
      %v1400 = vpop.f32.mrb[0].mxu0
      %1401 = vmatprep.mubr.f32.mxu0 0.0
      %1402 = vmatmul.mubr.f32.gmra.mrb[0].mxu0 %v1220
      %v1403 = vpop.f32.mrb[0].mxu0
      %v1404 = vadd.f32 %v1183, %v1403
      %v1405 = vpop.f32.mrb[0].mxu0
      %1406 = vmatprep.mubr.f32.mxu0 0.0
      %1407 = vmatmul.mubr.f32.gmra.mrb[0].mxu0 %v1223
      %v1408 = vpop.f32.mrb[0].mxu0
      %v1409 = vadd.f32 %v1183, %v1408
      %v1410 = vpop.f32.mrb[0].mxu0
      %1411 = vmatprep.mubr.f32.mxu0 0.0
      %1412 = vmatmul.mubr.f32.gmra.mrb[0].mxu0 %v1226
      %v1413 = vpop.f32.mrb[0].mxu0
      %v1414 = vadd.f32 %v1183, %v1413
      %v1415 = vpop.f32.mrb[0].mxu0
      %1416 = vmatprep.mubr.f32.mxu0 0.0
      %1417 = vmatmul.mubr.f32.gmra.mrb[0].mxu0 %v1229
      %v1418 = vpop.f32.mrb[0].mxu0
      %v1419 = vadd.f32 %v1183, %v1418
      %v1420 = vpop.f32.mrb[0].mxu0
      %1421 = vmatprep.mubr.f32.mxu0 0.0
      %1422 = vmatmul.mubr.f32.gmra.mrb[0].mxu0 %v1232
      %v1423 = vpop.f32.mrb[0].mxu0
      %v1424 = vadd.f32 %v1183, %v1423
      %v1425 = vpop.f32.mrb[0].mxu0
      %1426 = vmatprep.mubr.f32.mxu0 0.0
      %1427 = vmatmul.mubr.f32.gmra.mrb[0].mxu0 %v1235
      %v1428 = vpop.f32.mrb[0].mxu0
      %v1429 = vadd.f32 %v1183, %v1428
      %v1430 = vpop.f32.mrb[0].mxu0
      %1431 = vmatprep.mubr.f32.mxu0 0.0
      %1432 = vmatmul.mubr.f32.gmra.mrb[0].mxu0 %v1238
      %v1433 = vpop.f32.mrb[0].mxu0
      %v1434 = vadd.f32 %v1183, %v1433
      %v1435 = vpop.f32.mrb[0].mxu0
      %1436 = vmatprep.mubr.f32.mxu0 0.0
      %1437 = vmatmul.mubr.f32.gmra.mrb[0].mxu0 %v1241
      %v1438 = vpop.f32.mrb[0].mxu0
      %v1439 = vadd.f32 %v1183, %v1438
      %v1440 = vpop.f32.mrb[0].mxu0
      %1441 = vmatprep.mubr.f32.mxu0 0.0
      %1442 = vmatmul.mubr.f32.gmra.mrb[0].mxu0 %v1244
      %v1443 = vpop.f32.mrb[0].mxu0
      %v1444 = vadd.f32 %v1183, %v1443
      %v1445 = vpop.f32.mrb[0].mxu0
      %1446 = vmatprep.mubr.f32.mxu0 0.0
      %1447 = vmatmul.mubr.f32.gmra.mrb[0].mxu0 %v1247
      %v1448 = vpop.f32.mrb[0].mxu0
      %v1449 = vadd.f32 %v1183, %v1448
      %v1450 = vpop.f32.mrb[0].mxu0
      %1451 = vmatprep.mubr.f32.mxu0 0.0
      %1452 = vmatmul.mubr.f32.gmra.mrb[0].mxu0 %v1250
      %v1453 = vpop.f32.mrb[0].mxu0
      %v1454 = vadd.f32 %v1183, %v1453
      %v1455 = vpop.f32.mrb[0].mxu0
      %1456 = vmatprep.mubr.f32.mxu0 0.0
      %1457 = vmatmul.mubr.f32.gmra.mrb[0].mxu0 %v1253
      %v1458 = vpop.f32.mrb[0].mxu0
      %v1459 = vadd.f32 %v1183, %v1458
      %v1460 = vpop.f32.mrb[0].mxu0
      %1461 = vmatprep.mubr.f32.mxu0 0.0
      %1462 = vmatmul.mubr.f32.gmra.mrb[0].mxu0 %v1256
      %v1463 = vpop.f32.mrb[0].mxu0
      %v1464 = vadd.f32 %v1183, %v1463
      %v1465 = vpop.f32.mrb[0].mxu0
      %1466 = vmatprep.mubr.f32.mxu0 0.0
      %1467 = vmatmul.mubr.f32.gmra.mrb[0].mxu0 %v1259
      %v1468 = vpop.f32.mrb[0].mxu0
      %v1469 = vadd.f32 %v1183, %v1468
      %v1470 = vpop.f32.mrb[0].mxu0
      %1471 = vmatprep.mubr.f32.mxu0 0.0
      %1472 = vmatmul.mubr.f32.gmra.mrb[0].mxu0 %v1262
      %v1473 = vpop.f32.mrb[0].mxu0
      %v1474 = vadd.f32 %v1183, %v1473
      %v1475 = vpop.f32.mrb[0].mxu0
      %1476 = vmatprep.mubr.f32.mxu0 0.0
      %1477 = vmatmul.mubr.f32.gmra.mrb[0].mxu0 %v1265
      %v1478 = vpop.f32.mrb[0].mxu0
      %v1479 = vadd.f32 %v1183, %v1478
      %v1480 = vpop.f32.mrb[0].mxu0
      %1481 = vmatprep.mubr.f32.mxu0 0.0
      %1482 = vmatmul.mubr.f32.gmra.mrb[0].mxu0 %v1268
      %v1483 = vpop.f32.mrb[0].mxu0
      %v1484 = vadd.f32 %v1183, %v1483
      %v1485 = vpop.f32.mrb[0].mxu0
      %1486 = vmatprep.mubr.f32.mxu0 0.0
      %1487 = vmatmul.mubr.f32.gmra.mrb[0].mxu0 %v1271
      %v1488 = vpop.f32.mrb[0].mxu0
      %v1489 = vadd.f32 %v1183, %v1488
      %v1490 = vpop.f32.mrb[0].mxu0
      %1491 = vmatprep.mubr.f32.mxu0 0.0
      %1492 = vmatmul.mubr.f32.gmra.mrb[0].mxu0 %v1274
      %v1493 = vpop.f32.mrb[0].mxu0
      %v1494 = vadd.f32 %v1183, %v1493
      %v1495 = vpop.f32.mrb[0].mxu0
      %1496 = vmatprep.mubr.f32.mxu0 0.0
      %1497 = vmatmul.mubr.f32.gmra.mrb[0].mxu0 %v1277
      %v1498 = vpop.f32.mrb[0].mxu0
      %v1499 = vadd.f32 %v1183, %v1498
      %v1500 = vpop.f32.mrb[0].mxu0
      %1501 = vmatprep.mubr.f32.mxu0 0.0
      %1502 = vmatmul.mubr.f32.gmra.mrb[0].mxu0 %v1280
      %v1503 = vpop.f32.mrb[0].mxu0
      %v1504 = vadd.f32 %v1183, %v1503
      %v1505 = vpop.f32.mrb[0].mxu0
      %1506 = vdwg.mxu0
      %v1507 = vtanh.pop %v1349
      %v1508 = vtanh.pop %v1354
      %v1509 = vtanh.pop %v1359
      %v1510 = vtanh.pop %v1364
      %v1511 = vtanh.pop %v1369
      %v1512 = vtanh.pop %v1374
      %v1513 = vtanh.pop %v1379
      %v1514 = vtanh.pop %v1384
      %v1515 = vtanh.pop %v1389
      %v1516 = vtanh.pop %v1394
      %v1517 = vtanh.pop %v1399
      %v1518 = vtanh.pop %v1404
      %v1519 = vtanh.pop %v1409
      %v1520 = vtanh.pop %v1414
      %v1521 = vtanh.pop %v1419
      %v1522 = vtanh.pop %v1424
      %v1523 = vtanh.pop %v1429
      %v1524 = vtanh.pop %v1434
      %v1525 = vtanh.pop %v1439
      %v1526 = vtanh.pop %v1444
      %v1527 = vtanh.pop %v1449
      %v1528 = vtanh.pop %v1454
      %v1529 = vtanh.pop %v1459
      %v1530 = vtanh.pop %v1464
      %v1531 = vtanh.pop %v1469
      %v1532 = vtanh.pop %v1474
      %v1533 = vtanh.pop %v1479
      %v1534 = vtanh.pop %v1484
      %v1535 = vtanh.pop %v1489
      %v1536 = vtanh.pop %v1494
      %v1537 = vtanh.pop %v1499
      %v1538 = vtanh.pop %v1504
      %v1539 = vld [vmem:[%s5] sm:$0xff]
      %v1540 = vld [vmem:[%s5 + $0x8] sm:$0xff]
      %v1541 = vld [vmem:[%s5 + $0x10] sm:$0xff]
      %v1542 = vld [vmem:[%s5 + $0x18] sm:$0xff]
      %v1543 = vld [vmem:[%s5 + $0x20] sm:$0xff]
      %v1544 = vld [vmem:[%s5 + $0x28] sm:$0xff]
      %v1545 = vld [vmem:[%s5 + $0x30] sm:$0xff]
      %v1546 = vld [vmem:[%s5 + $0x38] sm:$0xff]
      %v1547 = vld [vmem:[%s6] sm:$0x1]
      %v1549 = vlaneseq
      %v1550 = vshrl.u32 %v1549, 7
      %v1551 = vsub.s32 0, %v1550
      %v1552 = vrot.slane %v1547, %v1551
      %v1555 = vsel %vm1185, %v1507, 0
      %v1558 = vsel %vm1185, %v1508, 0
      %v1561 = vsel %vm1185, %v1509, 0
      %v1564 = vsel %vm1185, %v1510, 0
      %v1567 = vsel %vm1185, %v1511, 0
      %v1570 = vsel %vm1185, %v1512, 0
      %v1573 = vsel %vm1185, %v1513, 0
      %v1576 = vsel %vm1185, %v1514, 0
      %v1579 = vsel %vm1185, %v1515, 0
      %v1582 = vsel %vm1185, %v1516, 0
      %v1585 = vsel %vm1185, %v1517, 0
      %v1588 = vsel %vm1185, %v1518, 0
      %v1591 = vsel %vm1185, %v1519, 0
      %v1594 = vsel %vm1185, %v1520, 0
      %v1597 = vsel %vm1185, %v1521, 0
      %v1600 = vsel %vm1185, %v1522, 0
      %v1603 = vsel %vm1185, %v1523, 0
      %v1606 = vsel %vm1185, %v1524, 0
      %v1609 = vsel %vm1185, %v1525, 0
      %v1612 = vsel %vm1185, %v1526, 0
      %v1615 = vsel %vm1185, %v1527, 0
      %v1618 = vsel %vm1185, %v1528, 0
      %v1621 = vsel %vm1185, %v1529, 0
      %v1624 = vsel %vm1185, %v1530, 0
      %v1627 = vsel %vm1185, %v1531, 0
      %v1630 = vsel %vm1185, %v1532, 0
      %v1633 = vsel %vm1185, %v1533, 0
      %v1636 = vsel %vm1185, %v1534, 0
      %v1639 = vsel %vm1185, %v1535, 0
      %v1642 = vsel %vm1185, %v1536, 0
      %v1645 = vsel %vm1185, %v1537, 0
      %v1648 = vsel %vm1185, %v1538, 0
      %1650 = vmatprep.subr.mxu0 0.0
      %1651 = vmatpush1.msra.mxu0 %v1539
      %1652 = vmatprep.subr.mxu0 0.0
      %1653 = vmatpush1.msra.mxu0 %v1540
      %1654 = vmatprep.subr.mxu0 0.0
      %1655 = vmatpush1.msra.mxu0 %v1541
      %1656 = vmatprep.subr.mxu0 0.0
      %1657 = vmatpush1.msra.mxu0 %v1542
      %1658 = vmatprep.subr.mxu0 0.0
      %1659 = vmatpush1.msra.mxu0 %v1543
      %1660 = vmatprep.subr.mxu0 0.0
      %1661 = vmatpush1.msra.mxu0 %v1544
      %1662 = vmatprep.subr.mxu0 0.0
      %1663 = vmatpush1.msra.mxu0 %v1545
      %1664 = vmatprep.subr.mxu0 0.0
      %1665 = vmatpush1.msra.mxu0 %v1546
      %1666 = vmatprep.subr.mxu0 0.0
      %1667 = vmatpush1.msra.mxu0 0.0
      %1668 = vmatprep.subr.mxu0 0.0
      %1669 = vmatpush1.msra.mxu0 0.0
      %1670 = vmatprep.subr.mxu0 0.0
      %1671 = vmatpush1.msra.mxu0 0.0
      %1672 = vmatprep.subr.mxu0 0.0
      %1673 = vmatpush1.msra.mxu0 0.0
      %1674 = vmatprep.subr.mxu0 0.0
      %1675 = vmatpush1.msra.mxu0 0.0
      %1676 = vmatprep.subr.mxu0 0.0
      %1677 = vmatpush1.msra.mxu0 0.0
      %1678 = vmatprep.subr.mxu0 0.0
      %1679 = vmatpush1.msra.mxu0 0.0
      %1680 = vmatprep.subr.mxu0 0.0
      %1681 = vmatpush1.msra.mxu0 0.0
      %1682 = vmatprep.subr.mxu0 0.0
      %1683 = vmatpush1.msra.mxu0 0.0
      %1684 = vmatprep.subr.mxu0 0.0
      %1685 = vmatpush1.msra.mxu0 0.0
      %1686 = vmatprep.subr.mxu0 0.0
      %1687 = vmatpush1.msra.mxu0 0.0
      %1688 = vmatprep.subr.mxu0 0.0
      %1689 = vmatpush1.msra.mxu0 0.0
      %1690 = vmatprep.subr.mxu0 0.0
      %1691 = vmatpush1.msra.mxu0 0.0
      %1692 = vmatprep.subr.mxu0 0.0
      %1693 = vmatpush1.msra.mxu0 0.0
      %1694 = vmatprep.subr.mxu0 0.0
      %1695 = vmatpush1.msra.mxu0 0.0
      %1696 = vmatprep.subr.mxu0 0.0
      %1697 = vmatpush1.msra.mxu0 0.0
      %1698 = vmatprep.subr.mxu0 0.0
      %1699 = vmatpush1.msra.mxu0 0.0
      %1700 = vmatprep.subr.mxu0 0.0
      %1701 = vmatpush1.msra.mxu0 0.0
      %1702 = vmatprep.subr.mxu0 0.0
      %1703 = vmatpush1.msra.mxu0 0.0
      %1704 = vmatprep.subr.mxu0 0.0
      %1705 = vmatpush1.msra.mxu0 0.0
      %1706 = vmatprep.subr.mxu0 0.0
      %1707 = vmatpush1.msra.mxu0 0.0
      %1708 = vmatprep.subr.mxu0 0.0
      %1709 = vmatpush1.msra.mxu0 0.0
      %1710 = vmatprep.subr.mxu0 0.0
      %1711 = vmatpush1.msra.mxu0 0.0
      %1712 = vmatprep.subr.mxu0 0.0
      %1713 = vmatpush1.msra.mxu0 0.0
      %1714 = vmatprep.mubr.f32.mxu0 0.0
      %1715 = vmatmul.mubr.f32.gmra.mrb[0].mxu0 %v1555
      %v1716 = vpop.f32.mrb[0].mxu0
      %v1717 = vadd.f32 %v1552, %v1716
      %v1718 = vpop.f32.mrb[0].mxu0
      %1719 = vmatprep.mubr.f32.mxu0 0.0
      %1720 = vmatmul.mubr.f32.gmra.mrb[0].mxu0 %v1558
      %v1721 = vpop.f32.mrb[0].mxu0
      %v1722 = vadd.f32 %v1552, %v1721
      %v1723 = vpop.f32.mrb[0].mxu0
      %1724 = vmatprep.mubr.f32.mxu0 0.0
      %1725 = vmatmul.mubr.f32.gmra.mrb[0].mxu0 %v1561
      %v1726 = vpop.f32.mrb[0].mxu0
      %v1727 = vadd.f32 %v1552, %v1726
      %v1728 = vpop.f32.mrb[0].mxu0
      %1729 = vmatprep.mubr.f32.mxu0 0.0
      %1730 = vmatmul.mubr.f32.gmra.mrb[0].mxu0 %v1564
      %v1731 = vpop.f32.mrb[0].mxu0
      %v1732 = vadd.f32 %v1552, %v1731
      %v1733 = vpop.f32.mrb[0].mxu0
      %1734 = vmatprep.mubr.f32.mxu0 0.0
      %1735 = vmatmul.mubr.f32.gmra.mrb[0].mxu0 %v1567
      %v1736 = vpop.f32.mrb[0].mxu0
      %v1737 = vadd.f32 %v1552, %v1736
      %v1738 = vpop.f32.mrb[0].mxu0
      %1739 = vmatprep.mubr.f32.mxu0 0.0
      %1740 = vmatmul.mubr.f32.gmra.mrb[0].mxu0 %v1570
      %v1741 = vpop.f32.mrb[0].mxu0
      %v1742 = vadd.f32 %v1552, %v1741
      %v1743 = vpop.f32.mrb[0].mxu0
      %1744 = vmatprep.mubr.f32.mxu0 0.0
      %1745 = vmatmul.mubr.f32.gmra.mrb[0].mxu0 %v1573
      %v1746 = vpop.f32.mrb[0].mxu0
      %v1747 = vadd.f32 %v1552, %v1746
      %v1748 = vpop.f32.mrb[0].mxu0
      %1749 = vmatprep.mubr.f32.mxu0 0.0
      %1750 = vmatmul.mubr.f32.gmra.mrb[0].mxu0 %v1576
      %v1751 = vpop.f32.mrb[0].mxu0
      %v1752 = vadd.f32 %v1552, %v1751
      %v1753 = vpop.f32.mrb[0].mxu0
      %1754 = vmatprep.mubr.f32.mxu0 0.0
      %1755 = vmatmul.mubr.f32.gmra.mrb[0].mxu0 %v1579
      %v1756 = vpop.f32.mrb[0].mxu0
      %v1757 = vadd.f32 %v1552, %v1756
      %v1758 = vpop.f32.mrb[0].mxu0
      %1759 = vmatprep.mubr.f32.mxu0 0.0
      %1760 = vmatmul.mubr.f32.gmra.mrb[0].mxu0 %v1582
      %v1761 = vpop.f32.mrb[0].mxu0
      %v1762 = vadd.f32 %v1552, %v1761
      %v1763 = vpop.f32.mrb[0].mxu0
      %1764 = vmatprep.mubr.f32.mxu0 0.0
      %1765 = vmatmul.mubr.f32.gmra.mrb[0].mxu0 %v1585
      %v1766 = vpop.f32.mrb[0].mxu0
      %v1767 = vadd.f32 %v1552, %v1766
      %v1768 = vpop.f32.mrb[0].mxu0
      %1769 = vmatprep.mubr.f32.mxu0 0.0
      %1770 = vmatmul.mubr.f32.gmra.mrb[0].mxu0 %v1588
      %v1771 = vpop.f32.mrb[0].mxu0
      %v1772 = vadd.f32 %v1552, %v1771
      %v1773 = vpop.f32.mrb[0].mxu0
      %1774 = vmatprep.mubr.f32.mxu0 0.0
      %1775 = vmatmul.mubr.f32.gmra.mrb[0].mxu0 %v1591
      %v1776 = vpop.f32.mrb[0].mxu0
      %v1777 = vadd.f32 %v1552, %v1776
      %v1778 = vpop.f32.mrb[0].mxu0
      %1779 = vmatprep.mubr.f32.mxu0 0.0
      %1780 = vmatmul.mubr.f32.gmra.mrb[0].mxu0 %v1594
      %v1781 = vpop.f32.mrb[0].mxu0
      %v1782 = vadd.f32 %v1552, %v1781
      %v1783 = vpop.f32.mrb[0].mxu0
      %1784 = vmatprep.mubr.f32.mxu0 0.0
      %1785 = vmatmul.mubr.f32.gmra.mrb[0].mxu0 %v1597
      %v1786 = vpop.f32.mrb[0].mxu0
      %v1787 = vadd.f32 %v1552, %v1786
      %v1788 = vpop.f32.mrb[0].mxu0
      %1789 = vmatprep.mubr.f32.mxu0 0.0
      %1790 = vmatmul.mubr.f32.gmra.mrb[0].mxu0 %v1600
      %v1791 = vpop.f32.mrb[0].mxu0
      %v1792 = vadd.f32 %v1552, %v1791
      %v1793 = vpop.f32.mrb[0].mxu0
      %1794 = vmatprep.mubr.f32.mxu0 0.0
      %1795 = vmatmul.mubr.f32.gmra.mrb[0].mxu0 %v1603
      %v1796 = vpop.f32.mrb[0].mxu0
      %v1797 = vadd.f32 %v1552, %v1796
      %v1798 = vpop.f32.mrb[0].mxu0
      %1799 = vmatprep.mubr.f32.mxu0 0.0
      %1800 = vmatmul.mubr.f32.gmra.mrb[0].mxu0 %v1606
      %v1801 = vpop.f32.mrb[0].mxu0
      %v1802 = vadd.f32 %v1552, %v1801
      %v1803 = vpop.f32.mrb[0].mxu0
      %1804 = vmatprep.mubr.f32.mxu0 0.0
      %1805 = vmatmul.mubr.f32.gmra.mrb[0].mxu0 %v1609
      %v1806 = vpop.f32.mrb[0].mxu0
      %v1807 = vadd.f32 %v1552, %v1806
      %v1808 = vpop.f32.mrb[0].mxu0
      %1809 = vmatprep.mubr.f32.mxu0 0.0
      %1810 = vmatmul.mubr.f32.gmra.mrb[0].mxu0 %v1612
      %v1811 = vpop.f32.mrb[0].mxu0
      %v1812 = vadd.f32 %v1552, %v1811
      %v1813 = vpop.f32.mrb[0].mxu0
      %1814 = vmatprep.mubr.f32.mxu0 0.0
      %1815 = vmatmul.mubr.f32.gmra.mrb[0].mxu0 %v1615
      %v1816 = vpop.f32.mrb[0].mxu0
      %v1817 = vadd.f32 %v1552, %v1816
      %v1818 = vpop.f32.mrb[0].mxu0
      %1819 = vmatprep.mubr.f32.mxu0 0.0
      %1820 = vmatmul.mubr.f32.gmra.mrb[0].mxu0 %v1618
      %v1821 = vpop.f32.mrb[0].mxu0
      %v1822 = vadd.f32 %v1552, %v1821
      %v1823 = vpop.f32.mrb[0].mxu0
      %1824 = vmatprep.mubr.f32.mxu0 0.0
      %1825 = vmatmul.mubr.f32.gmra.mrb[0].mxu0 %v1621
      %v1826 = vpop.f32.mrb[0].mxu0
      %v1827 = vadd.f32 %v1552, %v1826
      %v1828 = vpop.f32.mrb[0].mxu0
      %1829 = vmatprep.mubr.f32.mxu0 0.0
      %1830 = vmatmul.mubr.f32.gmra.mrb[0].mxu0 %v1624
      %v1831 = vpop.f32.mrb[0].mxu0
      %v1832 = vadd.f32 %v1552, %v1831
      %v1833 = vpop.f32.mrb[0].mxu0
      %1834 = vmatprep.mubr.f32.mxu0 0.0
      %1835 = vmatmul.mubr.f32.gmra.mrb[0].mxu0 %v1627
      %v1836 = vpop.f32.mrb[0].mxu0
      %v1837 = vadd.f32 %v1552, %v1836
      %v1838 = vpop.f32.mrb[0].mxu0
      %1839 = vmatprep.mubr.f32.mxu0 0.0
      %1840 = vmatmul.mubr.f32.gmra.mrb[0].mxu0 %v1630
      %v1841 = vpop.f32.mrb[0].mxu0
      %v1842 = vadd.f32 %v1552, %v1841
      %v1843 = vpop.f32.mrb[0].mxu0
      %1844 = vmatprep.mubr.f32.mxu0 0.0
      %1845 = vmatmul.mubr.f32.gmra.mrb[0].mxu0 %v1633
      %v1846 = vpop.f32.mrb[0].mxu0
      %v1847 = vadd.f32 %v1552, %v1846
      %v1848 = vpop.f32.mrb[0].mxu0
      %1849 = vmatprep.mubr.f32.mxu0 0.0
      %1850 = vmatmul.mubr.f32.gmra.mrb[0].mxu0 %v1636
      %v1851 = vpop.f32.mrb[0].mxu0
      %v1852 = vadd.f32 %v1552, %v1851
      %v1853 = vpop.f32.mrb[0].mxu0
      %1854 = vmatprep.mubr.f32.mxu0 0.0
      %1855 = vmatmul.mubr.f32.gmra.mrb[0].mxu0 %v1639
      %v1856 = vpop.f32.mrb[0].mxu0
      %v1857 = vadd.f32 %v1552, %v1856
      %v1858 = vpop.f32.mrb[0].mxu0
      %1859 = vmatprep.mubr.f32.mxu0 0.0
      %1860 = vmatmul.mubr.f32.gmra.mrb[0].mxu0 %v1642
      %v1861 = vpop.f32.mrb[0].mxu0
      %v1862 = vadd.f32 %v1552, %v1861
      %v1863 = vpop.f32.mrb[0].mxu0
      %1864 = vmatprep.mubr.f32.mxu0 0.0
      %1865 = vmatmul.mubr.f32.gmra.mrb[0].mxu0 %v1645
      %v1866 = vpop.f32.mrb[0].mxu0
      %v1867 = vadd.f32 %v1552, %v1866
      %v1868 = vpop.f32.mrb[0].mxu0
      %1869 = vmatprep.mubr.f32.mxu0 0.0
      %1870 = vmatmul.mubr.f32.gmra.mrb[0].mxu0 %v1648
      %v1871 = vpop.f32.mrb[0].mxu0
      %v1872 = vadd.f32 %v1552, %v1871
      %v1873 = vpop.f32.mrb[0].mxu0
      %1874 = vdwg.mxu0
      %vm1875 = vcmask 15360
      %1876 = vst.msk [vmem:[%s280] sm:$0xff] %vm1875, %v1717
      %1877 = vst.msk [vmem:[%s280 + $0x8] sm:$0xff] %vm1875, %v1722
      %1878 = vst.msk [vmem:[%s280 + $0x10] sm:$0xff] %vm1875, %v1727
      %1879 = vst.msk [vmem:[%s280 + $0x18] sm:$0xff] %vm1875, %v1732
      %1880 = vst.msk [vmem:[%s280 + $0x20] sm:$0xff] %vm1875, %v1737
      %1881 = vst.msk [vmem:[%s280 + $0x28] sm:$0xff] %vm1875, %v1742
      %1882 = vst.msk [vmem:[%s280 + $0x30] sm:$0xff] %vm1875, %v1747
      %1883 = vst.msk [vmem:[%s280 + $0x38] sm:$0xff] %vm1875, %v1752
      %1884 = vst.msk [vmem:[%s280 + $0x40] sm:$0xff] %vm1875, %v1757
      %1885 = vst.msk [vmem:[%s280 + $0x48] sm:$0xff] %vm1875, %v1762
      %1886 = vst.msk [vmem:[%s280 + $0x50] sm:$0xff] %vm1875, %v1767
      %1887 = vst.msk [vmem:[%s280 + $0x58] sm:$0xff] %vm1875, %v1772
      %1888 = vst.msk [vmem:[%s280 + $0x60] sm:$0xff] %vm1875, %v1777
      %1889 = vst.msk [vmem:[%s280 + $0x68] sm:$0xff] %vm1875, %v1782
      %1890 = vst.msk [vmem:[%s280 + $0x70] sm:$0xff] %vm1875, %v1787
      %1891 = vst.msk [vmem:[%s280 + $0x78] sm:$0xff] %vm1875, %v1792
      %1892 = vst.msk [vmem:[%s280 + $0x80] sm:$0xff] %vm1875, %v1797
      %1893 = vst.msk [vmem:[%s280 + $0x88] sm:$0xff] %vm1875, %v1802
      %1894 = vst.msk [vmem:[%s280 + $0x90] sm:$0xff] %vm1875, %v1807
      %1895 = vst.msk [vmem:[%s280 + $0x98] sm:$0xff] %vm1875, %v1812
      %1896 = vst.msk [vmem:[%s280 + $0xa0] sm:$0xff] %vm1875, %v1817
      %1897 = vst.msk [vmem:[%s280 + $0xa8] sm:$0xff] %vm1875, %v1822
      %1898 = vst.msk [vmem:[%s280 + $0xb0] sm:$0xff] %vm1875, %v1827
      %1899 = vst.msk [vmem:[%s280 + $0xb8] sm:$0xff] %vm1875, %v1832
      %1900 = vst.msk [vmem:[%s280 + $0xc0] sm:$0xff] %vm1875, %v1837
      %1901 = vst.msk [vmem:[%s280 + $0xc8] sm:$0xff] %vm1875, %v1842
      %1902 = vst.msk [vmem:[%s280 + $0xd0] sm:$0xff] %vm1875, %v1847
      %1903 = vst.msk [vmem:[%s280 + $0xd8] sm:$0xff] %vm1875, %v1852
      %1904 = vst.msk [vmem:[%s280 + $0xe0] sm:$0xff] %vm1875, %v1857
      %1905 = vst.msk [vmem:[%s280 + $0xe8] sm:$0xff] %vm1875, %v1862
      %1906 = vst.msk [vmem:[%s280 + $0xf0] sm:$0xff] %vm1875, %v1867
      %1907 = vst.msk [vmem:[%s280 + $0xf8] sm:$0xff] %vm1875, %v1872
      %s1908 = smul.u32 32, %s18
      %p1909 = scmp.lt.s32.totalorder %s1908, 63
      %s1910 = scalar_select %p1909, %s1908, 63
      %s1911 = smul.addr %s1910, 8
      %s1912 = scalar_lea.vmem %s7, %s1911
      // Predicated region
      $region49: #{tpu_custom_call.1} parent=47 // pred_check
        %p1913 = pneg %p188
      $region50: #{tpu_custom_call.1} parent=47 // pred_check_branch
        %1915 = sbr.rel (%p1913) target = $region52
      $region51: #{tpu_custom_call.1} parent=47 // pred_region
        %s1916 = smul.u32 32, %s18
      $region52: #{tpu_custom_call.1} parent=47 // pred_fallthru
        _
    $region48: #{tpu_custom_call.1} parent=5 // pred_fallthru
      _
    %p1917 = scmp.le.s32.totalorder 2, %s13
    // Predicated region
    $region53: #{tpu_custom_call.1} parent=5 // pred_check
      %p1918 = pneg %p1917
    $region54: #{tpu_custom_call.1} parent=5 // pred_check_branch
      %1920 = sbr.rel (%p1918) target = $region56
    $region55: #{tpu_custom_call.1} parent=5 // pred_region
      %s1921 = ssub.s32 %s13, 2
      // Predicated region
      $region57: #{tpu_custom_call.1} parent=55 // pred_check
        %p1922 = pneg %p194
      $region58: #{tpu_custom_call.1} parent=55 // pred_check_branch
        %1924 = sbr.rel (%p1922) target = $region60
      $region59: #{tpu_custom_call.1} parent=55 // pred_region
        %s1925 = smul.u32 32, %s19
        %p1926 = scmp.lt.s32.totalorder %s1925, 63
        %s1927 = scalar_select %p1926, %s1925, 63
        %s1928 = smul.addr %s1927, 8
        %s1929 = scalar_lea.vmem %s7, %s1928
      $region60: #{tpu_custom_call.1} parent=55 // pred_fallthru
        _
    $region56: #{tpu_custom_call.1} parent=5 // pred_fallthru
      _
  $region6: #{tpu_custom_call.1} parent=0 // loop_footer
    %s17 = sadd.s32 1, %s13
  $region7: #{tpu_custom_call.1} parent=0 // loop_footer_branch
    %12 = sbr.rel target = $region3
  $region8: #{tpu_custom_call.1} parent=0 // loop_exit
    _

</llo_original>
